<compile_context>
chip_gen: v6e
topology: v6e:2x2x1
jax: 0.10.0
libtpu: 0.0.40
codegen_flags: <defaults>
</compile_context>

<pallas_src>
import functools

import jax
import jax.numpy as jnp
from jax import lax
from jax.experimental import pallas as pl
from jax.experimental.pallas import tpu as pltpu


def _cnn_block_kernel(x_ref, w_ref, b_ref, g_ref, bt_ref, o_ref, *,
                      N, Cin, Cout, H, W, eps):
    """Fused ReflectionPad(1) + 3x3 conv + bias + ReLU + BatchNorm (batch stats).

    x_ref:  (N*Cin, H*W)   flat NCHW input (lane-dense, whole batch in VMEM)
    w_ref:  (9, Cout, Cin) conv weights, one (Cout, Cin) slab per tap (ky*3+kx)
    b_ref:  (Cout, 1)      conv bias
    g_ref:  (Cout, 1)      BN gamma
    bt_ref: (Cout, 1)      BN beta
    o_ref:  (N, Cout, H*W) output (free reshape to NCHW in the wrapper)
    """
    HW = H * W
    NC = N * Cin

    xf = x_ref[...]                                        # (N*Cin, HW) f32

    # Lane-position masks (x coordinate of every flat pixel), computed once.
    col_id = lax.broadcasted_iota(jnp.int32, (NC, HW), 1) % W
    first_col = col_id == 0
    last_col = col_id == (W - 1)

    # ---- vertical neighbours with reflection folded in ---------------------
    # Rows are contiguous W-lane blocks of the flat image, so a +/-1 row shift is a
    # lane-block shift and the reflected boundary row is spliced in directly.
    v_m1 = jnp.concatenate([xf[:, W:2 * W], xf[:, :HW - W]], axis=1)        # row y-1 (row 0 -> row 1)
    v_p1 = jnp.concatenate([xf[:, W:], xf[:, HW - 2 * W:HW - W]], axis=1)   # row y+1 (row H-1 -> row H-2)

    # ---- horizontal neighbours (x-1 / x+1) with reflection at column edges --
    # Circular-wrap lanes of `left`/`right` are always replaced by the selects.
    taps = []
    for v in (v_m1, xf, v_p1):                             # ky = 0, 1, 2
        left = jnp.concatenate([v[:, 1:], v[:, :1]], axis=1)            # v[p+1]
        right = jnp.concatenate([v[:, HW - 1:], v[:, :HW - 1]], axis=1)  # v[p-1]
        taps.append(jnp.where(first_col, left, right))    # kx = 0 : x-1 (reflect x=0 -> 1)
        taps.append(v)                                     # kx = 1 : x
        taps.append(jnp.where(last_col, right, left))     # kx = 2 : x+1 (reflect x=W-1 -> W-2)

    # Hoisted loop invariants.
    w_all = w_ref[...]                                     # (9, Cout, Cin)
    bias_b = jnp.broadcast_to(b_ref[...], (Cout, HW))      # (Cout, HW)
    inv_cnt = 1.0 / float(N * HW)

    # ---- pass 1: conv + bias + ReLU streamed into o_ref; per-channel sums ----
    sum_c = jnp.zeros((Cout, 1), jnp.float32)
    for n in range(N):                                     # N small: static unroll
        acc = bias_b
        for t in range(9):
            rhs = taps[t][n * Cin:(n + 1) * Cin, :]        # (Cin, HW)
            acc = acc + lax.dot_general(
                w_all[t], rhs,
                dimension_numbers=(((1,), (0,)), ((), ())),
                preferred_element_type=jnp.float32)
        y = jnp.maximum(acc, 0.0)
        o_ref[n] = y                                       # full 256-lane stores
        sum_c = sum_c + jnp.sum(y, axis=1, keepdims=True)

    # ---- BatchNorm2d with batch statistics (training mode), biased variance ----
    mean = sum_c * inv_cnt                                 # (Cout, 1)
    mean_b = jnp.broadcast_to(mean, (Cout, HW))            # hoisted broadcast

    var_c = jnp.zeros((Cout, 1), jnp.float32)
    for n in range(N):                                     # two-pass (centered) variance
        d = o_ref[n] - mean_b
        var_c = var_c + jnp.sum(d * d, axis=1, keepdims=True)
    inv_std = lax.rsqrt(var_c * inv_cnt + eps)             # (Cout, 1)

    scale_c = g_ref[...] * inv_std
    shift_c = bt_ref[...] - mean * scale_c
    scale_b = jnp.broadcast_to(scale_c, (Cout, HW))        # hoisted broadcasts
    shift_b = jnp.broadcast_to(shift_c, (Cout, HW))

    for n in range(N):                                     # pass 3: normalize in place
        o_ref[n] = o_ref[n] * scale_b + shift_b


def cnn_block_forward(x_nchw, w_oihw, b, gamma, beta, eps=1e-5):
    N, Cin, H, W = x_nchw.shape
    Cout = w_oihw.shape[0]
    HW = H * W

    # Free reshape (contiguous trailing dims) -- no input transpose at all.
    x_flat = x_nchw.reshape(N * Cin, HW).astype(jnp.float32)
    # Tap-major weights: (ky, kx, Cout, Cin) -> (9, Cout, Cin).  Tiny, one-time.
    w_taps = jnp.transpose(w_oihw, (2, 3, 0, 1)).reshape(9, Cout, Cin).astype(jnp.float32)
    b_c = b.reshape(Cout, 1).astype(jnp.float32)
    g_c = gamma.reshape(Cout, 1).astype(jnp.float32)
    bt_c = beta.reshape(Cout, 1).astype(jnp.float32)

    kernel = functools.partial(
        _cnn_block_kernel, N=N, Cin=Cin, Cout=Cout, H=H, W=W, eps=float(eps))

    out_flat = pl.pallas_call(
        kernel,
        out_shape=jax.ShapeDtypeStruct((N, Cout, HW), jnp.float32),
        grid_spec=pltpu.PrefetchScalarGridSpec(
            num_scalar_prefetch=0,
            grid=(1,),                                     # single step: whole batch in VMEM
            in_specs=[
                pl.BlockSpec((N * Cin, HW), lambda i: (0, 0)),
                pl.BlockSpec((9, Cout, Cin), lambda i: (0, 0, 0)),
                pl.BlockSpec((Cout, 1), lambda i: (0, 0)),
                pl.BlockSpec((Cout, 1), lambda i: (0, 0)),
                pl.BlockSpec((Cout, 1), lambda i: (0, 0)),
            ],
            out_specs=pl.BlockSpec((N, Cout, HW), lambda i: (0, 0, 0)),
        ),
        compiler_params=pltpu.CompilerParams(dimension_semantics=("arbitrary",)),
    )(x_flat, w_taps, b_c, g_c, bt_c)

    # Free reshape (contiguous trailing dims) -> NCHW; no transpose needed.
    return out_flat.reshape(N, Cout, H, W)


def reference_forward(x_nchw, w_oihw, b, gamma, beta, eps=1e-5):
    """Pure-JAX reference of the PyTorch CNNBlock forward (training-mode BN)."""
    x_pad = jnp.pad(x_nchw, ((0, 0), (0, 0), (1, 1), (1, 1)), mode="reflect")
    y = lax.conv_general_dilated(
        x_pad, w_oihw, window_strides=(1, 1), padding="VALID",
        dimension_numbers=("NCHW", "OIHW", "NCHW"))
    y = y + b.reshape(1, -1, 1, 1)
    y = jnp.maximum(y, 0.0)
    mean = y.mean(axis=(0, 2, 3), keepdims=True)
    var = y.var(axis=(0, 2, 3), keepdims=True)             # biased
    return (y - mean) / jnp.sqrt(var + eps) * gamma.reshape(1, -1, 1, 1) \
        + beta.reshape(1, -1, 1, 1)


if __name__ == "__main__":
    N, Cin, Cout, H, W = 2, 4, 8, 16, 16

    key = jax.random.PRNGKey(0)
    kx, kw, kb = jax.random.split(key, 3)
    x = jax.random.normal(kx, (N, Cin, H, W), dtype=jnp.float32)
    # Deterministic parameter init (Conv2d weights/bias; BN gamma=1, beta=0).
    w = jax.random.normal(kw, (Cout, Cin, 3, 3), dtype=jnp.float32) * 0.1
    b = jax.random.normal(kb, (Cout,), dtype=jnp.float32) * 0.1
    gamma = jnp.ones((Cout,), jnp.float32)
    beta = jnp.zeros((Cout,), jnp.float32)

    out = cnn_block_forward(x, w, b, gamma, beta)
    out = jax.block_until_ready(out)

    ref = reference_forward(x, w, b, gamma, beta)
    assert out.shape == (N, Cout, H, W)
    assert jnp.allclose(out, ref, rtol=1e-3, atol=1e-3), \
        f"max abs diff {jnp.max(jnp.abs(out - ref))}"

    print("KERNEL_OK")
</pallas_src>

<mosaic_0001>
module attributes {stable_mosaic.version = 11 : i64} {
  func.func @_cnn_block_kernel(%arg0: i32, %arg1: memref<8x256xf32, #tpu.memory_space<vmem>>, %arg2: memref<9x8x4xf32, #tpu.memory_space<vmem>>, %arg3: memref<8x1xf32, #tpu.memory_space<vmem>>, %arg4: memref<8x1xf32, #tpu.memory_space<vmem>>, %arg5: memref<8x1xf32, #tpu.memory_space<vmem>>, %arg6: memref<2x8x256xf32, #tpu.memory_space<vmem>>) attributes {dimension_semantics = [#tpu.dimension_semantics<arbitrary>], iteration_bounds = array<i64: 1>, scalar_prefetch = 0 : i64, scratch_operands = 0 : i64, tpu.core_type = #tpu.core_type<tc>, window_params = [{pipeline_mode = #tpu.pipeline_mode<synchronous>, transform_indices = @transform_0, window_bounds = array<i64: 8, 256>}, {pipeline_mode = #tpu.pipeline_mode<synchronous>, transform_indices = @transform_1, window_bounds = array<i64: 9, 8, 4>}, {pipeline_mode = #tpu.pipeline_mode<synchronous>, transform_indices = @transform_2, window_bounds = array<i64: 8, 1>}, {pipeline_mode = #tpu.pipeline_mode<synchronous>, transform_indices = @transform_3, window_bounds = array<i64: 8, 1>}, {pipeline_mode = #tpu.pipeline_mode<synchronous>, transform_indices = @transform_4, window_bounds = array<i64: 8, 1>}, {pipeline_mode = #tpu.pipeline_mode<synchronous>, transform_indices = @transform_5, window_bounds = array<i64: 2, 8, 256>}]} {
    %c0 = arith.constant 0 : index
    %c0_0 = arith.constant 0 : index
    %0 = vector.load %arg1[%c0, %c0_0] : memref<8x256xf32, #tpu.memory_space<vmem>>, vector<8x256xf32>
    %1 = tpu.iota {dimensions = array<i32: 1>} : vector<8x256xi32>
    %c16_i32 = arith.constant 16 : i32
    %c0_i32 = arith.constant 0 : i32
    %2 = arith.cmpi eq, %c16_i32, %c0_i32 : i32
    %c1_i32 = arith.constant 1 : i32
    %3 = arith.select %2, %c1_i32, %c16_i32 : i32
    %4 = vector.broadcast %3 : i32 to vector<8x256xi32>
    %5 = arith.remsi %1, %4 : vector<8x256xi32>
    %c0_i32_1 = arith.constant 0 : i32
    %6 = vector.broadcast %c0_i32_1 : i32 to vector<8x256xi32>
    %7 = arith.cmpi ne, %5, %6 : vector<8x256xi32>
    %c0_i32_2 = arith.constant 0 : i32
    %8 = vector.broadcast %c0_i32_2 : i32 to vector<8x256xi32>
    %9 = arith.cmpi slt, %5, %8 : vector<8x256xi32>
    %c0_i32_3 = arith.constant 0 : i32
    %10 = arith.cmpi slt, %3, %c0_i32_3 : i32
    %11 = vector.broadcast %10 : i1 to vector<8x256xi1>
    %12 = vector.broadcast %11 : vector<8x256xi1> to vector<8x256xi1>
    %13 = arith.xori %9, %12 : vector<8x256xi1>
    %14 = arith.andi %13, %7 : vector<8x256xi1>
    %15 = vector.broadcast %3 : i32 to vector<8x256xi32>
    %16 = arith.addi %5, %15 : vector<8x256xi32>
    %17 = arith.select %14, %16, %5 : vector<8x256xi1>, vector<8x256xi32>
    %c0_i32_4 = arith.constant 0 : i32
    %18 = vector.broadcast %c0_i32_4 : i32 to vector<8x256xi32>
    %19 = arith.cmpi eq, %17, %18 : vector<8x256xi32>
    %c15_i32 = arith.constant 15 : i32
    %20 = vector.broadcast %c15_i32 : i32 to vector<8x256xi32>
    %21 = arith.cmpi eq, %17, %20 : vector<8x256xi32>
    %22 = vector.extract_strided_slice %0 {offsets = [0, 16], sizes = [8, 16], strides = [1, 1]} : vector<8x256xf32> to vector<8x16xf32>
    %23 = vector.extract_strided_slice %0 {offsets = [0, 0], sizes = [8, 240], strides = [1, 1]} : vector<8x256xf32> to vector<8x240xf32>
    %24 = tpu.concatenate %22, %23 in 1 : vector<8x16xf32>, vector<8x240xf32> -> vector<8x256xf32>
    %25 = vector.extract_strided_slice %0 {offsets = [0, 16], sizes = [8, 240], strides = [1, 1]} : vector<8x256xf32> to vector<8x240xf32>
    %26 = vector.extract_strided_slice %0 {offsets = [0, 224], sizes = [8, 16], strides = [1, 1]} : vector<8x256xf32> to vector<8x16xf32>
    %27 = tpu.concatenate %25, %26 in 1 : vector<8x240xf32>, vector<8x16xf32> -> vector<8x256xf32>
    %28 = vector.extract_strided_slice %24 {offsets = [0, 1], sizes = [8, 255], strides = [1, 1]} : vector<8x256xf32> to vector<8x255xf32>
    %29 = vector.extract_strided_slice %24 {offsets = [0, 0], sizes = [8, 1], strides = [1, 1]} : vector<8x256xf32> to vector<8x1xf32>
    %30 = tpu.concatenate %28, %29 in 1 : vector<8x255xf32>, vector<8x1xf32> -> vector<8x256xf32>
    %31 = vector.extract_strided_slice %24 {offsets = [0, 255], sizes = [8, 1], strides = [1, 1]} : vector<8x256xf32> to vector<8x1xf32>
    %32 = vector.extract_strided_slice %24 {offsets = [0, 0], sizes = [8, 255], strides = [1, 1]} : vector<8x256xf32> to vector<8x255xf32>
    %33 = tpu.concatenate %31, %32 in 1 : vector<8x1xf32>, vector<8x255xf32> -> vector<8x256xf32>
    %34 = arith.select %19, %30, %33 : vector<8x256xi1>, vector<8x256xf32>
    %35 = arith.select %21, %33, %30 : vector<8x256xi1>, vector<8x256xf32>
    %36 = vector.extract_strided_slice %0 {offsets = [0, 1], sizes = [8, 255], strides = [1, 1]} : vector<8x256xf32> to vector<8x255xf32>
    %37 = vector.extract_strided_slice %0 {offsets = [0, 0], sizes = [8, 1], strides = [1, 1]} : vector<8x256xf32> to vector<8x1xf32>
    %38 = tpu.concatenate %36, %37 in 1 : vector<8x255xf32>, vector<8x1xf32> -> vector<8x256xf32>
    %39 = vector.extract_strided_slice %0 {offsets = [0, 255], sizes = [8, 1], strides = [1, 1]} : vector<8x256xf32> to vector<8x1xf32>
    %40 = vector.extract_strided_slice %0 {offsets = [0, 0], sizes = [8, 255], strides = [1, 1]} : vector<8x256xf32> to vector<8x255xf32>
    %41 = tpu.concatenate %39, %40 in 1 : vector<8x1xf32>, vector<8x255xf32> -> vector<8x256xf32>
    %42 = arith.select %19, %38, %41 : vector<8x256xi1>, vector<8x256xf32>
    %43 = arith.select %21, %41, %38 : vector<8x256xi1>, vector<8x256xf32>
    %44 = vector.extract_strided_slice %27 {offsets = [0, 1], sizes = [8, 255], strides = [1, 1]} : vector<8x256xf32> to vector<8x255xf32>
    %45 = vector.extract_strided_slice %27 {offsets = [0, 0], sizes = [8, 1], strides = [1, 1]} : vector<8x256xf32> to vector<8x1xf32>
    %46 = tpu.concatenate %44, %45 in 1 : vector<8x255xf32>, vector<8x1xf32> -> vector<8x256xf32>
    %47 = vector.extract_strided_slice %27 {offsets = [0, 255], sizes = [8, 1], strides = [1, 1]} : vector<8x256xf32> to vector<8x1xf32>
    %48 = vector.extract_strided_slice %27 {offsets = [0, 0], sizes = [8, 255], strides = [1, 1]} : vector<8x256xf32> to vector<8x255xf32>
    %49 = tpu.concatenate %47, %48 in 1 : vector<8x1xf32>, vector<8x255xf32> -> vector<8x256xf32>
    %50 = arith.select %19, %46, %49 : vector<8x256xi1>, vector<8x256xf32>
    %51 = arith.select %21, %49, %46 : vector<8x256xi1>, vector<8x256xf32>
    %c0_5 = arith.constant 0 : index
    %c0_6 = arith.constant 0 : index
    %c0_7 = arith.constant 0 : index
    %52 = vector.load %arg2[%c0_5, %c0_6, %c0_7] : memref<9x8x4xf32, #tpu.memory_space<vmem>>, vector<9x8x4xf32>
    %c0_8 = arith.constant 0 : index
    %c0_9 = arith.constant 0 : index
    %53 = vector.load %arg3[%c0_8, %c0_9] : memref<8x1xf32, #tpu.memory_space<vmem>>, vector<8x1xf32>
    %54 = vector.shape_cast %53 : vector<8x1xf32> to vector<8x1xf32>
    %55 = vector.broadcast %54 : vector<8x1xf32> to vector<8x256xf32>
    %cst = arith.constant 0.000000e+00 : f32
    %56 = vector.broadcast %cst : f32 to vector<8x1xf32>
    %57 = vector.extract_strided_slice %34 {offsets = [0, 0], sizes = [4, 256], strides = [1, 1]} : vector<8x256xf32> to vector<4x256xf32>
    %58 = vector.extract_strided_slice %52 {offsets = [0, 0, 0], sizes = [1, 8, 4], strides = [1, 1, 1]} : vector<9x8x4xf32> to vector<1x8x4xf32>
    %59 = vector.shape_cast %58 : vector<1x8x4xf32> to vector<8x4xf32>
    %cst_10 = arith.constant dense<0.000000e+00> : vector<8x256xf32>
    %60 = tpu.matmul %59, %57, %cst_10 {dimension_numbers = #tpu.dot_dimension_numbers<[1], [0], [0], [1], [0, 0, 1, 1], [], []>} : vector<8x4xf32>, vector<4x256xf32>, vector<8x256xf32> -> vector<8x256xf32>
    %61 = arith.addf %55, %60 : vector<8x256xf32>
    %62 = vector.extract_strided_slice %24 {offsets = [0, 0], sizes = [4, 256], strides = [1, 1]} : vector<8x256xf32> to vector<4x256xf32>
    %63 = vector.extract_strided_slice %52 {offsets = [1, 0, 0], sizes = [1, 8, 4], strides = [1, 1, 1]} : vector<9x8x4xf32> to vector<1x8x4xf32>
    %64 = vector.shape_cast %63 : vector<1x8x4xf32> to vector<8x4xf32>
    %cst_11 = arith.constant dense<0.000000e+00> : vector<8x256xf32>
    %65 = tpu.matmul %64, %62, %cst_11 {dimension_numbers = #tpu.dot_dimension_numbers<[1], [0], [0], [1], [0, 0, 1, 1], [], []>} : vector<8x4xf32>, vector<4x256xf32>, vector<8x256xf32> -> vector<8x256xf32>
    %66 = arith.addf %61, %65 : vector<8x256xf32>
    %67 = vector.extract_strided_slice %35 {offsets = [0, 0], sizes = [4, 256], strides = [1, 1]} : vector<8x256xf32> to vector<4x256xf32>
    %68 = vector.extract_strided_slice %52 {offsets = [2, 0, 0], sizes = [1, 8, 4], strides = [1, 1, 1]} : vector<9x8x4xf32> to vector<1x8x4xf32>
    %69 = vector.shape_cast %68 : vector<1x8x4xf32> to vector<8x4xf32>
    %cst_12 = arith.constant dense<0.000000e+00> : vector<8x256xf32>
    %70 = tpu.matmul %69, %67, %cst_12 {dimension_numbers = #tpu.dot_dimension_numbers<[1], [0], [0], [1], [0, 0, 1, 1], [], []>} : vector<8x4xf32>, vector<4x256xf32>, vector<8x256xf32> -> vector<8x256xf32>
    %71 = arith.addf %66, %70 : vector<8x256xf32>
    %72 = vector.extract_strided_slice %42 {offsets = [0, 0], sizes = [4, 256], strides = [1, 1]} : vector<8x256xf32> to vector<4x256xf32>
    %73 = vector.extract_strided_slice %52 {offsets = [3, 0, 0], sizes = [1, 8, 4], strides = [1, 1, 1]} : vector<9x8x4xf32> to vector<1x8x4xf32>
    %74 = vector.shape_cast %73 : vector<1x8x4xf32> to vector<8x4xf32>
    %cst_13 = arith.constant dense<0.000000e+00> : vector<8x256xf32>
    %75 = tpu.matmul %74, %72, %cst_13 {dimension_numbers = #tpu.dot_dimension_numbers<[1], [0], [0], [1], [0, 0, 1, 1], [], []>} : vector<8x4xf32>, vector<4x256xf32>, vector<8x256xf32> -> vector<8x256xf32>
    %76 = arith.addf %71, %75 : vector<8x256xf32>
    %77 = vector.extract_strided_slice %0 {offsets = [0, 0], sizes = [4, 256], strides = [1, 1]} : vector<8x256xf32> to vector<4x256xf32>
    %78 = vector.extract_strided_slice %52 {offsets = [4, 0, 0], sizes = [1, 8, 4], strides = [1, 1, 1]} : vector<9x8x4xf32> to vector<1x8x4xf32>
    %79 = vector.shape_cast %78 : vector<1x8x4xf32> to vector<8x4xf32>
    %cst_14 = arith.constant dense<0.000000e+00> : vector<8x256xf32>
    %80 = tpu.matmul %79, %77, %cst_14 {dimension_numbers = #tpu.dot_dimension_numbers<[1], [0], [0], [1], [0, 0, 1, 1], [], []>} : vector<8x4xf32>, vector<4x256xf32>, vector<8x256xf32> -> vector<8x256xf32>
    %81 = arith.addf %76, %80 : vector<8x256xf32>
    %82 = vector.extract_strided_slice %43 {offsets = [0, 0], sizes = [4, 256], strides = [1, 1]} : vector<8x256xf32> to vector<4x256xf32>
    %83 = vector.extract_strided_slice %52 {offsets = [5, 0, 0], sizes = [1, 8, 4], strides = [1, 1, 1]} : vector<9x8x4xf32> to vector<1x8x4xf32>
    %84 = vector.shape_cast %83 : vector<1x8x4xf32> to vector<8x4xf32>
    %cst_15 = arith.constant dense<0.000000e+00> : vector<8x256xf32>
    %85 = tpu.matmul %84, %82, %cst_15 {dimension_numbers = #tpu.dot_dimension_numbers<[1], [0], [0], [1], [0, 0, 1, 1], [], []>} : vector<8x4xf32>, vector<4x256xf32>, vector<8x256xf32> -> vector<8x256xf32>
    %86 = arith.addf %81, %85 : vector<8x256xf32>
    %87 = vector.extract_strided_slice %50 {offsets = [0, 0], sizes = [4, 256], strides = [1, 1]} : vector<8x256xf32> to vector<4x256xf32>
    %88 = vector.extract_strided_slice %52 {offsets = [6, 0, 0], sizes = [1, 8, 4], strides = [1, 1, 1]} : vector<9x8x4xf32> to vector<1x8x4xf32>
    %89 = vector.shape_cast %88 : vector<1x8x4xf32> to vector<8x4xf32>
    %cst_16 = arith.constant dense<0.000000e+00> : vector<8x256xf32>
    %90 = tpu.matmul %89, %87, %cst_16 {dimension_numbers = #tpu.dot_dimension_numbers<[1], [0], [0], [1], [0, 0, 1, 1], [], []>} : vector<8x4xf32>, vector<4x256xf32>, vector<8x256xf32> -> vector<8x256xf32>
    %91 = arith.addf %86, %90 : vector<8x256xf32>
    %92 = vector.extract_strided_slice %27 {offsets = [0, 0], sizes = [4, 256], strides = [1, 1]} : vector<8x256xf32> to vector<4x256xf32>
    %93 = vector.extract_strided_slice %52 {offsets = [7, 0, 0], sizes = [1, 8, 4], strides = [1, 1, 1]} : vector<9x8x4xf32> to vector<1x8x4xf32>
    %94 = vector.shape_cast %93 : vector<1x8x4xf32> to vector<8x4xf32>
    %cst_17 = arith.constant dense<0.000000e+00> : vector<8x256xf32>
    %95 = tpu.matmul %94, %92, %cst_17 {dimension_numbers = #tpu.dot_dimension_numbers<[1], [0], [0], [1], [0, 0, 1, 1], [], []>} : vector<8x4xf32>, vector<4x256xf32>, vector<8x256xf32> -> vector<8x256xf32>
    %96 = arith.addf %91, %95 : vector<8x256xf32>
    %97 = vector.extract_strided_slice %51 {offsets = [0, 0], sizes = [4, 256], strides = [1, 1]} : vector<8x256xf32> to vector<4x256xf32>
    %98 = vector.extract_strided_slice %52 {offsets = [8, 0, 0], sizes = [1, 8, 4], strides = [1, 1, 1]} : vector<9x8x4xf32> to vector<1x8x4xf32>
    %99 = vector.shape_cast %98 : vector<1x8x4xf32> to vector<8x4xf32>
    %cst_18 = arith.constant dense<0.000000e+00> : vector<8x256xf32>
    %100 = tpu.matmul %99, %97, %cst_18 {dimension_numbers = #tpu.dot_dimension_numbers<[1], [0], [0], [1], [0, 0, 1, 1], [], []>} : vector<8x4xf32>, vector<4x256xf32>, vector<8x256xf32> -> vector<8x256xf32>
    %101 = arith.addf %96, %100 : vector<8x256xf32>
    %cst_19 = arith.constant 0.000000e+00 : f32
    %102 = vector.broadcast %cst_19 : f32 to vector<8x256xf32>
    %103 = arith.maximumf %101, %102 : vector<8x256xf32>
    %c0_20 = arith.constant 0 : index
    %c0_21 = arith.constant 0 : index
    %c0_22 = arith.constant 0 : index
    %104 = vector.load %arg6[%c0_20, %c0_21, %c0_22] : memref<2x8x256xf32, #tpu.memory_space<vmem>>, vector<1x8x256xf32>
    %105 = vector.shape_cast %104 : vector<1x8x256xf32> to vector<8x256xf32>
    %106 = vector.shape_cast %103 : vector<8x256xf32> to vector<1x8x256xf32>
    tpu.vector_store %arg6[%c0_20, %c0_21, %c0_22], %106 {strides = array<i32>} : memref<2x8x256xf32, #tpu.memory_space<vmem>>, vector<1x8x256xf32>,
    %cst_23 = arith.constant dense<0.000000e+00> : vector<8xf32>
    %107 = vector.multi_reduction <add>, %103, %cst_23 [1] : vector<8x256xf32> to vector<8xf32>
    %108 = vector.shape_cast %107 : vector<8xf32> to vector<8x1xf32>
    %109 = arith.addf %56, %108 : vector<8x1xf32>
    %110 = vector.extract_strided_slice %34 {offsets = [4, 0], sizes = [4, 256], strides = [1, 1]} : vector<8x256xf32> to vector<4x256xf32>
    %111 = vector.extract_strided_slice %52 {offsets = [0, 0, 0], sizes = [1, 8, 4], strides = [1, 1, 1]} : vector<9x8x4xf32> to vector<1x8x4xf32>
    %112 = vector.shape_cast %111 : vector<1x8x4xf32> to vector<8x4xf32>
    %cst_24 = arith.constant dense<0.000000e+00> : vector<8x256xf32>
    %113 = tpu.matmul %112, %110, %cst_24 {dimension_numbers = #tpu.dot_dimension_numbers<[1], [0], [0], [1], [0, 0, 1, 1], [], []>} : vector<8x4xf32>, vector<4x256xf32>, vector<8x256xf32> -> vector<8x256xf32>
    %114 = arith.addf %55, %113 : vector<8x256xf32>
    %115 = vector.extract_strided_slice %24 {offsets = [4, 0], sizes = [4, 256], strides = [1, 1]} : vector<8x256xf32> to vector<4x256xf32>
    %116 = vector.extract_strided_slice %52 {offsets = [1, 0, 0], sizes = [1, 8, 4], strides = [1, 1, 1]} : vector<9x8x4xf32> to vector<1x8x4xf32>
    %117 = vector.shape_cast %116 : vector<1x8x4xf32> to vector<8x4xf32>
    %cst_25 = arith.constant dense<0.000000e+00> : vector<8x256xf32>
    %118 = tpu.matmul %117, %115, %cst_25 {dimension_numbers = #tpu.dot_dimension_numbers<[1], [0], [0], [1], [0, 0, 1, 1], [], []>} : vector<8x4xf32>, vector<4x256xf32>, vector<8x256xf32> -> vector<8x256xf32>
    %119 = arith.addf %114, %118 : vector<8x256xf32>
    %120 = vector.extract_strided_slice %35 {offsets = [4, 0], sizes = [4, 256], strides = [1, 1]} : vector<8x256xf32> to vector<4x256xf32>
    %121 = vector.extract_strided_slice %52 {offsets = [2, 0, 0], sizes = [1, 8, 4], strides = [1, 1, 1]} : vector<9x8x4xf32> to vector<1x8x4xf32>
    %122 = vector.shape_cast %121 : vector<1x8x4xf32> to vector<8x4xf32>
    %cst_26 = arith.constant dense<0.000000e+00> : vector<8x256xf32>
    %123 = tpu.matmul %122, %120, %cst_26 {dimension_numbers = #tpu.dot_dimension_numbers<[1], [0], [0], [1], [0, 0, 1, 1], [], []>} : vector<8x4xf32>, vector<4x256xf32>, vector<8x256xf32> -> vector<8x256xf32>
    %124 = arith.addf %119, %123 : vector<8x256xf32>
    %125 = vector.extract_strided_slice %42 {offsets = [4, 0], sizes = [4, 256], strides = [1, 1]} : vector<8x256xf32> to vector<4x256xf32>
    %126 = vector.extract_strided_slice %52 {offsets = [3, 0, 0], sizes = [1, 8, 4], strides = [1, 1, 1]} : vector<9x8x4xf32> to vector<1x8x4xf32>
    %127 = vector.shape_cast %126 : vector<1x8x4xf32> to vector<8x4xf32>
    %cst_27 = arith.constant dense<0.000000e+00> : vector<8x256xf32>
    %128 = tpu.matmul %127, %125, %cst_27 {dimension_numbers = #tpu.dot_dimension_numbers<[1], [0], [0], [1], [0, 0, 1, 1], [], []>} : vector<8x4xf32>, vector<4x256xf32>, vector<8x256xf32> -> vector<8x256xf32>
    %129 = arith.addf %124, %128 : vector<8x256xf32>
    %130 = vector.extract_strided_slice %0 {offsets = [4, 0], sizes = [4, 256], strides = [1, 1]} : vector<8x256xf32> to vector<4x256xf32>
    %131 = vector.extract_strided_slice %52 {offsets = [4, 0, 0], sizes = [1, 8, 4], strides = [1, 1, 1]} : vector<9x8x4xf32> to vector<1x8x4xf32>
    %132 = vector.shape_cast %131 : vector<1x8x4xf32> to vector<8x4xf32>
    %cst_28 = arith.constant dense<0.000000e+00> : vector<8x256xf32>
    %133 = tpu.matmul %132, %130, %cst_28 {dimension_numbers = #tpu.dot_dimension_numbers<[1], [0], [0], [1], [0, 0, 1, 1], [], []>} : vector<8x4xf32>, vector<4x256xf32>, vector<8x256xf32> -> vector<8x256xf32>
    %134 = arith.addf %129, %133 : vector<8x256xf32>
    %135 = vector.extract_strided_slice %43 {offsets = [4, 0], sizes = [4, 256], strides = [1, 1]} : vector<8x256xf32> to vector<4x256xf32>
    %136 = vector.extract_strided_slice %52 {offsets = [5, 0, 0], sizes = [1, 8, 4], strides = [1, 1, 1]} : vector<9x8x4xf32> to vector<1x8x4xf32>
    %137 = vector.shape_cast %136 : vector<1x8x4xf32> to vector<8x4xf32>
    %cst_29 = arith.constant dense<0.000000e+00> : vector<8x256xf32>
    %138 = tpu.matmul %137, %135, %cst_29 {dimension_numbers = #tpu.dot_dimension_numbers<[1], [0], [0], [1], [0, 0, 1, 1], [], []>} : vector<8x4xf32>, vector<4x256xf32>, vector<8x256xf32> -> vector<8x256xf32>
    %139 = arith.addf %134, %138 : vector<8x256xf32>
    %140 = vector.extract_strided_slice %50 {offsets = [4, 0], sizes = [4, 256], strides = [1, 1]} : vector<8x256xf32> to vector<4x256xf32>
    %141 = vector.extract_strided_slice %52 {offsets = [6, 0, 0], sizes = [1, 8, 4], strides = [1, 1, 1]} : vector<9x8x4xf32> to vector<1x8x4xf32>
    %142 = vector.shape_cast %141 : vector<1x8x4xf32> to vector<8x4xf32>
    %cst_30 = arith.constant dense<0.000000e+00> : vector<8x256xf32>
    %143 = tpu.matmul %142, %140, %cst_30 {dimension_numbers = #tpu.dot_dimension_numbers<[1], [0], [0], [1], [0, 0, 1, 1], [], []>} : vector<8x4xf32>, vector<4x256xf32>, vector<8x256xf32> -> vector<8x256xf32>
    %144 = arith.addf %139, %143 : vector<8x256xf32>
    %145 = vector.extract_strided_slice %27 {offsets = [4, 0], sizes = [4, 256], strides = [1, 1]} : vector<8x256xf32> to vector<4x256xf32>
    %146 = vector.extract_strided_slice %52 {offsets = [7, 0, 0], sizes = [1, 8, 4], strides = [1, 1, 1]} : vector<9x8x4xf32> to vector<1x8x4xf32>
    %147 = vector.shape_cast %146 : vector<1x8x4xf32> to vector<8x4xf32>
    %cst_31 = arith.constant dense<0.000000e+00> : vector<8x256xf32>
    %148 = tpu.matmul %147, %145, %cst_31 {dimension_numbers = #tpu.dot_dimension_numbers<[1], [0], [0], [1], [0, 0, 1, 1], [], []>} : vector<8x4xf32>, vector<4x256xf32>, vector<8x256xf32> -> vector<8x256xf32>
    %149 = arith.addf %144, %148 : vector<8x256xf32>
    %150 = vector.extract_strided_slice %51 {offsets = [4, 0], sizes = [4, 256], strides = [1, 1]} : vector<8x256xf32> to vector<4x256xf32>
    %151 = vector.extract_strided_slice %52 {offsets = [8, 0, 0], sizes = [1, 8, 4], strides = [1, 1, 1]} : vector<9x8x4xf32> to vector<1x8x4xf32>
    %152 = vector.shape_cast %151 : vector<1x8x4xf32> to vector<8x4xf32>
    %cst_32 = arith.constant dense<0.000000e+00> : vector<8x256xf32>
    %153 = tpu.matmul %152, %150, %cst_32 {dimension_numbers = #tpu.dot_dimension_numbers<[1], [0], [0], [1], [0, 0, 1, 1], [], []>} : vector<8x4xf32>, vector<4x256xf32>, vector<8x256xf32> -> vector<8x256xf32>
    %154 = arith.addf %149, %153 : vector<8x256xf32>
    %cst_33 = arith.constant 0.000000e+00 : f32
    %155 = vector.broadcast %cst_33 : f32 to vector<8x256xf32>
    %156 = arith.maximumf %154, %155 : vector<8x256xf32>
    %c1 = arith.constant 1 : index
    %c0_34 = arith.constant 0 : index
    %c0_35 = arith.constant 0 : index
    %157 = vector.load %arg6[%c1, %c0_34, %c0_35] : memref<2x8x256xf32, #tpu.memory_space<vmem>>, vector<1x8x256xf32>
    %158 = vector.shape_cast %157 : vector<1x8x256xf32> to vector<8x256xf32>
    %159 = vector.shape_cast %156 : vector<8x256xf32> to vector<1x8x256xf32>
    tpu.vector_store %arg6[%c1, %c0_34, %c0_35], %159 {strides = array<i32>} : memref<2x8x256xf32, #tpu.memory_space<vmem>>, vector<1x8x256xf32>,
    %cst_36 = arith.constant dense<0.000000e+00> : vector<8xf32>
    %160 = vector.multi_reduction <add>, %156, %cst_36 [1] : vector<8x256xf32> to vector<8xf32>
    %161 = vector.shape_cast %160 : vector<8xf32> to vector<8x1xf32>
    %162 = arith.addf %109, %161 : vector<8x1xf32>
    %cst_37 = arith.constant 0.001953125 : f32
    %163 = vector.broadcast %cst_37 : f32 to vector<8x1xf32>
    %164 = arith.mulf %162, %163 : vector<8x1xf32>
    %165 = vector.shape_cast %164 : vector<8x1xf32> to vector<8x1xf32>
    %166 = vector.broadcast %165 : vector<8x1xf32> to vector<8x256xf32>
    %cst_38 = arith.constant 0.000000e+00 : f32
    %167 = vector.broadcast %cst_38 : f32 to vector<8x1xf32>
    %c0_39 = arith.constant 0 : index
    %c0_40 = arith.constant 0 : index
    %c0_41 = arith.constant 0 : index
    %168 = vector.load %arg6[%c0_39, %c0_40, %c0_41] : memref<2x8x256xf32, #tpu.memory_space<vmem>>, vector<1x8x256xf32>
    %169 = vector.shape_cast %168 : vector<1x8x256xf32> to vector<8x256xf32>
    %170 = arith.subf %169, %166 : vector<8x256xf32>
    %171 = arith.mulf %170, %170 : vector<8x256xf32>
    %cst_42 = arith.constant dense<0.000000e+00> : vector<8xf32>
    %172 = vector.multi_reduction <add>, %171, %cst_42 [1] : vector<8x256xf32> to vector<8xf32>
    %173 = vector.shape_cast %172 : vector<8xf32> to vector<8x1xf32>
    %174 = arith.addf %167, %173 : vector<8x1xf32>
    %c1_43 = arith.constant 1 : index
    %c0_44 = arith.constant 0 : index
    %c0_45 = arith.constant 0 : index
    %175 = vector.load %arg6[%c1_43, %c0_44, %c0_45] : memref<2x8x256xf32, #tpu.memory_space<vmem>>, vector<1x8x256xf32>
    %176 = vector.shape_cast %175 : vector<1x8x256xf32> to vector<8x256xf32>
    %177 = arith.subf %176, %166 : vector<8x256xf32>
    %178 = arith.mulf %177, %177 : vector<8x256xf32>
    %cst_46 = arith.constant dense<0.000000e+00> : vector<8xf32>
    %179 = vector.multi_reduction <add>, %178, %cst_46 [1] : vector<8x256xf32> to vector<8xf32>
    %180 = vector.shape_cast %179 : vector<8xf32> to vector<8x1xf32>
    %181 = arith.addf %174, %180 : vector<8x1xf32>
    %cst_47 = arith.constant 0.001953125 : f32
    %182 = vector.broadcast %cst_47 : f32 to vector<8x1xf32>
    %183 = arith.mulf %181, %182 : vector<8x1xf32>
    %cst_48 = arith.constant 9.99999974E-6 : f32
    %184 = vector.broadcast %cst_48 : f32 to vector<8x1xf32>
    %185 = arith.addf %183, %184 : vector<8x1xf32>
    %186 = math.rsqrt %185 : vector<8x1xf32>
    %c0_49 = arith.constant 0 : index
    %c0_50 = arith.constant 0 : index
    %187 = vector.load %arg4[%c0_49, %c0_50] : memref<8x1xf32, #tpu.memory_space<vmem>>, vector<8x1xf32>
    %188 = arith.mulf %187, %186 : vector<8x1xf32>
    %c0_51 = arith.constant 0 : index
    %c0_52 = arith.constant 0 : index
    %189 = vector.load %arg5[%c0_51, %c0_52] : memref<8x1xf32, #tpu.memory_space<vmem>>, vector<8x1xf32>
    %190 = arith.mulf %164, %188 : vector<8x1xf32>
    %191 = arith.subf %189, %190 : vector<8x1xf32>
    %192 = vector.shape_cast %188 : vector<8x1xf32> to vector<8x1xf32>
    %193 = vector.broadcast %192 : vector<8x1xf32> to vector<8x256xf32>
    %194 = vector.shape_cast %191 : vector<8x1xf32> to vector<8x1xf32>
    %195 = vector.broadcast %194 : vector<8x1xf32> to vector<8x256xf32>
    %c0_53 = arith.constant 0 : index
    %c0_54 = arith.constant 0 : index
    %c0_55 = arith.constant 0 : index
    %196 = vector.load %arg6[%c0_53, %c0_54, %c0_55] : memref<2x8x256xf32, #tpu.memory_space<vmem>>, vector<1x8x256xf32>
    %197 = vector.shape_cast %196 : vector<1x8x256xf32> to vector<8x256xf32>
    %198 = arith.mulf %197, %193 : vector<8x256xf32>
    %199 = arith.addf %198, %195 : vector<8x256xf32>
    %c0_56 = arith.constant 0 : index
    %c0_57 = arith.constant 0 : index
    %c0_58 = arith.constant 0 : index
    %200 = vector.load %arg6[%c0_56, %c0_57, %c0_58] : memref<2x8x256xf32, #tpu.memory_space<vmem>>, vector<1x8x256xf32>
    %201 = vector.shape_cast %200 : vector<1x8x256xf32> to vector<8x256xf32>
    %202 = vector.shape_cast %199 : vector<8x256xf32> to vector<1x8x256xf32>
    tpu.vector_store %arg6[%c0_56, %c0_57, %c0_58], %202 {strides = array<i32>} : memref<2x8x256xf32, #tpu.memory_space<vmem>>, vector<1x8x256xf32>,
    %c1_59 = arith.constant 1 : index
    %c0_60 = arith.constant 0 : index
    %c0_61 = arith.constant 0 : index
    %203 = vector.load %arg6[%c1_59, %c0_60, %c0_61] : memref<2x8x256xf32, #tpu.memory_space<vmem>>, vector<1x8x256xf32>
    %204 = vector.shape_cast %203 : vector<1x8x256xf32> to vector<8x256xf32>
    %205 = arith.mulf %204, %193 : vector<8x256xf32>
    %206 = arith.addf %205, %195 : vector<8x256xf32>
    %c1_62 = arith.constant 1 : index
    %c0_63 = arith.constant 0 : index
    %c0_64 = arith.constant 0 : index
    %207 = vector.load %arg6[%c1_62, %c0_63, %c0_64] : memref<2x8x256xf32, #tpu.memory_space<vmem>>, vector<1x8x256xf32>
    %208 = vector.shape_cast %207 : vector<1x8x256xf32> to vector<8x256xf32>
    %209 = vector.shape_cast %206 : vector<8x256xf32> to vector<1x8x256xf32>
    tpu.vector_store %arg6[%c1_62, %c0_63, %c0_64], %209 {strides = array<i32>} : memref<2x8x256xf32, #tpu.memory_space<vmem>>, vector<1x8x256xf32>,
    return
  }
  func.func @transform_0(%arg0: i32) -> (i32, i32) {
    %c0_i32 = arith.constant 0 : i32
    %c0_i32_0 = arith.constant 0 : i32
    %c0_i32_1 = arith.constant 0 : i32
    return %c0_i32, %c0_i32_0 : i32, i32
  }
  func.func @transform_1(%arg0: i32) -> (i32, i32, i32) {
    %c0_i32 = arith.constant 0 : i32
    %c0_i32_0 = arith.constant 0 : i32
    %c0_i32_1 = arith.constant 0 : i32
    %c0_i32_2 = arith.constant 0 : i32
    return %c0_i32, %c0_i32_0, %c0_i32_1 : i32, i32, i32
  }
  func.func @transform_2(%arg0: i32) -> (i32, i32) {
    %c0_i32 = arith.constant 0 : i32
    %c0_i32_0 = arith.constant 0 : i32
    %c0_i32_1 = arith.constant 0 : i32
    return %c0_i32, %c0_i32_0 : i32, i32
  }
  func.func @transform_3(%arg0: i32) -> (i32, i32) {
    %c0_i32 = arith.constant 0 : i32
    %c0_i32_0 = arith.constant 0 : i32
    %c0_i32_1 = arith.constant 0 : i32
    return %c0_i32, %c0_i32_0 : i32, i32
  }
  func.func @transform_4(%arg0: i32) -> (i32, i32) {
    %c0_i32 = arith.constant 0 : i32
    %c0_i32_0 = arith.constant 0 : i32
    %c0_i32_1 = arith.constant 0 : i32
    return %c0_i32, %c0_i32_0 : i32, i32
  }
  func.func @transform_5(%arg0: i32) -> (i32, i32, i32) {
    %c0_i32 = arith.constant 0 : i32
    %c0_i32_0 = arith.constant 0 : i32
    %c0_i32_1 = arith.constant 0 : i32
    %c0_i32_2 = arith.constant 0 : i32
    return %c0_i32, %c0_i32_0, %c0_i32_1 : i32, i32, i32
  }
}

</mosaic_0001>

<llo_original>
// kernel: tpu_custom_call.1
$region0: #{tpu_custom_call.1}
  #allocation0 [shape = 'u32[]', space=smem, size = 0x4, offset = 0x4, fixed_abs, tag = 'smem constant byte address 0x4 - core index']
  #allocation1 [shape = 'u32[144,128]{1,0:T(1,128)}', space=vmem, size = 0x12000, scoped, tag = 'internal scratch']
  %s0 = inlined_call_operand.vmem [shape: f32[8,256], index: 0, kind: input, shape index: {}]
  %s1 = inlined_call_operand.vmem [shape: f32[9,8,4], index: 1, kind: input, shape index: {}]
  %s2 = inlined_call_operand.vmem [shape: f32[8,1], index: 2, kind: input, shape index: {}]
  %s3 = inlined_call_operand.vmem [shape: f32[8,1], index: 3, kind: input, shape index: {}]
  %s4 = inlined_call_operand.vmem [shape: f32[8,1], index: 4, kind: input, shape index: {}]
  %s5 = inlined_call_operand.hbm [shape: f32[2,8,256], index: 5, kind: output, shape index: {}]
  %s6 = sld [smem:[#allocation0]]
  $region30: #{tpu_custom_call.1} parent=0
    _
  %s8 = ssub.s32 1, %s6
  %s9 = scalar_select 0, %s8, %s6
  $region1: #{tpu_custom_call.1} parent=0
    #allocation2 [shape = 'u8[16384]{0}', space=vmem, size = 0x4000, scoped, tag = 'output window, operand 0, single buffered']
    #allocation3 [shape = 's32[1]{0}', space=sflag, size = 0x4, scoped, tag = 'scoped memory for tpu_custom_call.1']
    %10 = vsyncpa [#allocation3], 0
    // Predicated region
    $region2: #{tpu_custom_call.1} parent=1 // pred_check
      _
    $region3: #{tpu_custom_call.1} parent=1 // pred_check_branch
      %12 = sbr.rel (0) target = $region5
    $region4: #{tpu_custom_call.1} parent=1 // pred_region
      _
    $region5: #{tpu_custom_call.1} parent=1 // pred_fallthru
      _
    // Predicated region
    $region6: #{tpu_custom_call.1} parent=1 // pred_check
      _
    $region7: #{tpu_custom_call.1} parent=1 // pred_check_branch
      %14 = sbr.rel (0) target = $region9
    $region8: #{tpu_custom_call.1} parent=1 // pred_region
      _
    $region9: #{tpu_custom_call.1} parent=1 // pred_fallthru
      _
    // Predicated region
    $region10: #{tpu_custom_call.1} parent=1 // pred_check
      _
    $region11: #{tpu_custom_call.1} parent=1 // pred_check_branch
      %16 = sbr.rel (0) target = $region13
    $region12: #{tpu_custom_call.1} parent=1 // pred_region
      _
    $region13: #{tpu_custom_call.1} parent=1 // pred_fallthru
      _
    // Predicated region
    $region14: #{tpu_custom_call.1} parent=1 // pred_check
      _
    $region15: #{tpu_custom_call.1} parent=1 // pred_check_branch
      %18 = sbr.rel (0) target = $region17
    $region16: #{tpu_custom_call.1} parent=1 // pred_region
      _
    $region17: #{tpu_custom_call.1} parent=1 // pred_fallthru
      _
    // Predicated region
    $region18: #{tpu_custom_call.1} parent=1 // pred_check
      _
    $region19: #{tpu_custom_call.1} parent=1 // pred_check_branch
      %20 = sbr.rel (0) target = $region21
    $region20: #{tpu_custom_call.1} parent=1 // pred_region
      _
    $region21: #{tpu_custom_call.1} parent=1 // pred_fallthru
      _
    %v21 = vld [vmem:[%s0] sm:$0xff]
    %v22 = vld [vmem:[%s0 + $0x8] sm:$0xff]
    %v23 = vlaneseq
    %v24 = vand.u32 %v23, 127
    %v25 = vadd.s32 %v24, 128
    %vm26 = vcmp.lt.s32.totalorder %v24, 0
    %v27 = vsub.s32 0, %v24
    %v28 = vsel %vm26, %v27, %v24
    %v29 = vshrl.u32 %v28, 4
    %v30 = vand.u32 %v28, 15
    %v31 = vsub.s32 0, %v30
    %v32 = vsel %vm26, %v31, %v30
    %vm33 = vcmp.lt.s32.totalorder %v25, 0
    %v34 = vsub.s32 0, %v25
    %v35 = vsel %vm33, %v34, %v25
    %v36 = vshrl.u32 %v35, 4
    %v37 = vand.u32 %v35, 15
    %v38 = vsub.s32 0, %v37
    %v39 = vsel %vm33, %v38, %v37
    %vm40 = vcmp.ne.s32.totalorder %v32, 0
    %vm41 = vcmp.ne.s32.totalorder %v39, 0
    %vm42 = vcmp.lt.s32.totalorder %v32, 0
    %vm43 = vcmp.lt.s32.totalorder %v39, 0
    %vm44 = vmand %vm42, %vm40
    %vm45 = vmand %vm43, %vm41
    %v46 = vadd.s32 %v32, 16
    %v47 = vadd.s32 %v39, 16
    %v48 = vsel %vm44, %v46, %v32
    %v49 = vsel %vm45, %v47, %v39
    %vm50 = vcmp.eq.s32.totalorder %v48, 0
    %vm51 = vcmp.eq.s32.totalorder %v49, 0
    %vm52 = vcmp.eq.s32.totalorder %v48, 15
    %vm53 = vcmp.eq.s32.totalorder %v49, 15
    %55 = vrot.lane.b32.xlu0 %v21, 112
    %v56 = vpop.permute.xlu0 %55
    %59 = vrot.lane.b32.xlu0 %v21, 16
    %v60 = vpop.permute.xlu0 %59
    %61 = vrot.lane.b32.xlu0 %v22, 16
    %v62 = vpop.permute.xlu0 %61
    %vm63 = vcmask 130048
    %v64 = vsel %vm63, %v60, %v62
    %v66 = vsel %vm63, %v56, %v60
    %67 = vrot.lane.b32.xlu0 %v22, 112
    %v68 = vpop.permute.xlu0 %67
    %vm69 = vcmask 916480
    %v70 = vsel %vm69, %v56, %v68
    %v73 = vsel %vm69, %v68, %v62
    %75 = vrot.lane.b32.xlu0 %v66, 127
    %v76 = vpop.permute.xlu0 %75
    %77 = vrot.lane.b32.xlu0 %v64, 127
    %v78 = vpop.permute.xlu0 %77
    %vm79 = vcmask 1039360
    %v80 = vsel %vm79, %v76, %v78
    %v84 = vsel %vm79, %v78, %v76
    %85 = vrot.lane.b32.xlu0 %v64, 1
    %v86 = vpop.permute.xlu0 %85
    %88 = vrot.lane.b32.xlu0 %v66, 1
    %v89 = vpop.permute.xlu0 %88
    %vm90 = vcmask 7168
    %v91 = vsel %vm90, %v89, %v86
    %v94 = vsel %vm90, %v86, %v89
    %v95 = vsel %vm50, %v80, %v94
    %v96 = vsel %vm51, %v84, %v91
    %v97 = vsel %vm52, %v94, %v80
    %v98 = vsel %vm53, %v91, %v84
    %99 = vrot.lane.b32.xlu0 %v21, 127
    %v100 = vpop.permute.xlu0 %99
    %101 = vrot.lane.b32.xlu0 %v22, 127
    %v102 = vpop.permute.xlu0 %101
    %v103 = vsel %vm79, %v100, %v102
    %v107 = vsel %vm79, %v102, %v100
    %108 = vrot.lane.b32.xlu0 %v22, 1
    %v109 = vpop.permute.xlu0 %108
    %111 = vrot.lane.b32.xlu0 %v21, 1
    %v112 = vpop.permute.xlu0 %111
    %v113 = vsel %vm90, %v112, %v109
    %v116 = vsel %vm90, %v109, %v112
    %v117 = vsel %vm50, %v103, %v116
    %v118 = vsel %vm51, %v107, %v113
    %v119 = vsel %vm52, %v116, %v103
    %v120 = vsel %vm53, %v113, %v107
    %122 = vrot.lane.b32.xlu0 %v70, 127
    %v123 = vpop.permute.xlu0 %122
    %124 = vrot.lane.b32.xlu0 %v73, 127
    %v125 = vpop.permute.xlu0 %124
    %v126 = vsel %vm79, %v123, %v125
    %v130 = vsel %vm79, %v125, %v123
    %131 = vrot.lane.b32.xlu0 %v73, 1
    %v132 = vpop.permute.xlu0 %131
    %134 = vrot.lane.b32.xlu0 %v70, 1
    %v135 = vpop.permute.xlu0 %134
    %v136 = vsel %vm90, %v135, %v132
    %v139 = vsel %vm90, %v132, %v135
    %v140 = vsel %vm50, %v126, %v139
    %v141 = vsel %vm51, %v130, %v136
    %v142 = vsel %vm52, %v139, %v126
    %v143 = vsel %vm53, %v136, %v130
    %v144 = vld [vmem:[%s1] sm:$0xff]
    %v145 = vld [vmem:[%s1 + $0x8] sm:$0xff]
    %v146 = vld [vmem:[%s1 + $0x10] sm:$0xff]
    %v147 = vld [vmem:[%s1 + $0x18] sm:$0xff]
    %v148 = vld [vmem:[%s1 + $0x20] sm:$0xff]
    %v149 = vld [vmem:[%s1 + $0x28] sm:$0xff]
    %v150 = vld [vmem:[%s1 + $0x30] sm:$0xff]
    %v151 = vld [vmem:[%s1 + $0x38] sm:$0xff]
    %v152 = vld [vmem:[%s1 + $0x40] sm:$0xff]
    %v153 = vld [vmem:[%s2] sm:$0xff]
    %155 = vset.pattern.permute.xlu0 0
    %156 = vperm.xlu0 %155, %v153
    %v157 = vpop.permute.xlu0 %156
    %vm159 = vcmask 31744
    %v161 = vsel %vm159, %v144, 0
    %vm163 = vcmask 1043456
    %v165 = vsel %vm163, %v95, 0
    %v168 = vsel %vm163, %v96, 0
    %170 = vmatprep.subr.mxu0 0.0
    %171 = vmatpush1.msra.mxu0 0.0
    %172 = vmatprep.subr.mxu0 0.0
    %173 = vmatpush1.msra.mxu0 0.0
    %174 = vmatprep.subr.mxu0 0.0
    %175 = vmatpush1.msra.mxu0 0.0
    %176 = vmatprep.subr.mxu0 0.0
    %177 = vmatpush1.msra.mxu0 0.0
    %178 = vmatprep.subr.mxu0 0.0
    %179 = vmatpush1.msra.mxu0 0.0
    %180 = vmatprep.subr.mxu0 0.0
    %181 = vmatpush1.msra.mxu0 0.0
    %182 = vmatprep.subr.mxu0 0.0
    %183 = vmatpush1.msra.mxu0 0.0
    %184 = vmatprep.subr.mxu0 0.0
    %185 = vmatpush1.msra.mxu0 0.0
    %186 = vmatprep.subr.mxu0 0.0
    %187 = vmatpush1.msra.mxu0 0.0
    %188 = vmatprep.subr.mxu0 0.0
    %189 = vmatpush1.msra.mxu0 0.0
    %190 = vmatprep.subr.mxu0 0.0
    %191 = vmatpush1.msra.mxu0 0.0
    %192 = vmatprep.subr.mxu0 0.0
    %193 = vmatpush1.msra.mxu0 0.0
    %194 = vmatprep.subr.mxu0 0.0
    %195 = vmatpush1.msra.mxu0 0.0
    %196 = vmatprep.subr.mxu0 0.0
    %197 = vmatpush1.msra.mxu0 0.0
    %198 = vmatprep.subr.mxu0 0.0
    %199 = vmatpush1.msra.mxu0 0.0
    %200 = vmatprep.subr.mxu0 %v168
    %201 = vmatpush1.msra.mxu0 %v165
    %202 = vmatprep.subr.mxu0 0.0
    %203 = vmatpush2.msra.mxu0 0.0
    %204 = vmatprep.subr.mxu0 0.0
    %205 = vmatpush2.msra.mxu0 0.0
    %206 = vmatprep.subr.mxu0 0.0
    %207 = vmatpush2.msra.mxu0 0.0
    %208 = vmatprep.subr.mxu0 0.0
    %209 = vmatpush2.msra.mxu0 0.0
    %210 = vmatprep.subr.mxu0 0.0
    %211 = vmatpush2.msra.mxu0 0.0
    %212 = vmatprep.subr.mxu0 0.0
    %213 = vmatpush2.msra.mxu0 0.0
    %214 = vmatprep.subr.mxu0 0.0
    %215 = vmatpush2.msra.mxu0 0.0
    %216 = vmatprep.subr.mxu0 0.0
    %217 = vmatpush2.msra.mxu0 0.0
    %218 = vmatprep.subr.mxu0 0.0
    %219 = vmatpush2.msra.mxu0 0.0
    %220 = vmatprep.subr.mxu0 0.0
    %221 = vmatpush2.msra.mxu0 0.0
    %222 = vmatprep.subr.mxu0 0.0
    %223 = vmatpush2.msra.mxu0 0.0
    %224 = vmatprep.subr.mxu0 0.0
    %225 = vmatpush2.msra.mxu0 0.0
    %226 = vmatprep.subr.mxu0 0.0
    %227 = vmatpush2.msra.mxu0 0.0
    %228 = vmatprep.subr.mxu0 0.0
    %229 = vmatpush2.msra.mxu0 0.0
    %230 = vmatprep.subr.mxu0 0.0
    %231 = vmatpush2.msra.mxu0 0.0
    %232 = vmatprep.subr.mxu0 0.0
    %233 = vmatpush2.msra.mxu0 0.0
    %234 = vmatprep.mubr.f32.mxu0 0.0
    %235 = vmatmul.mubr.f32.gmra.mxu0 %v161
    %v236 = vpop.f32.mrf.mxu0
    %v237 = vadd.f32 0.0, %v236
    %v238 = vpop.f32.mrf.mxu0
    %v239 = vadd.f32 0.0, %v238
    %240 = vdwg.mxu0
    %v241 = vadd.f32 %v157, %v237
    %v242 = vadd.f32 %v157, %v239
    %v244 = vsel %vm159, %v145, 0
    %v246 = vsel %vm163, %v66, 0
    %v248 = vsel %vm163, %v64, 0
    %250 = vmatprep.subr.mxu0 0.0
    %251 = vmatpush1.msra.mxu0 0.0
    %252 = vmatprep.subr.mxu0 0.0
    %253 = vmatpush1.msra.mxu0 0.0
    %254 = vmatprep.subr.mxu0 0.0
    %255 = vmatpush1.msra.mxu0 0.0
    %256 = vmatprep.subr.mxu0 0.0
    %257 = vmatpush1.msra.mxu0 0.0
    %258 = vmatprep.subr.mxu0 0.0
    %259 = vmatpush1.msra.mxu0 0.0
    %260 = vmatprep.subr.mxu0 0.0
    %261 = vmatpush1.msra.mxu0 0.0
    %262 = vmatprep.subr.mxu0 0.0
    %263 = vmatpush1.msra.mxu0 0.0
    %264 = vmatprep.subr.mxu0 0.0
    %265 = vmatpush1.msra.mxu0 0.0
    %266 = vmatprep.subr.mxu0 0.0
    %267 = vmatpush1.msra.mxu0 0.0
    %268 = vmatprep.subr.mxu0 0.0
    %269 = vmatpush1.msra.mxu0 0.0
    %270 = vmatprep.subr.mxu0 0.0
    %271 = vmatpush1.msra.mxu0 0.0
    %272 = vmatprep.subr.mxu0 0.0
    %273 = vmatpush1.msra.mxu0 0.0
    %274 = vmatprep.subr.mxu0 0.0
    %275 = vmatpush1.msra.mxu0 0.0
    %276 = vmatprep.subr.mxu0 0.0
    %277 = vmatpush1.msra.mxu0 0.0
    %278 = vmatprep.subr.mxu0 0.0
    %279 = vmatpush1.msra.mxu0 0.0
    %280 = vmatprep.subr.mxu0 %v248
    %281 = vmatpush1.msra.mxu0 %v246
    %282 = vmatprep.subr.mxu0 0.0
    %283 = vmatpush2.msra.mxu0 0.0
    %284 = vmatprep.subr.mxu0 0.0
    %285 = vmatpush2.msra.mxu0 0.0
    %286 = vmatprep.subr.mxu0 0.0
    %287 = vmatpush2.msra.mxu0 0.0
    %288 = vmatprep.subr.mxu0 0.0
    %289 = vmatpush2.msra.mxu0 0.0
    %290 = vmatprep.subr.mxu0 0.0
    %291 = vmatpush2.msra.mxu0 0.0
    %292 = vmatprep.subr.mxu0 0.0
    %293 = vmatpush2.msra.mxu0 0.0
    %294 = vmatprep.subr.mxu0 0.0
    %295 = vmatpush2.msra.mxu0 0.0
    %296 = vmatprep.subr.mxu0 0.0
    %297 = vmatpush2.msra.mxu0 0.0
    %298 = vmatprep.subr.mxu0 0.0
    %299 = vmatpush2.msra.mxu0 0.0
    %300 = vmatprep.subr.mxu0 0.0
    %301 = vmatpush2.msra.mxu0 0.0
    %302 = vmatprep.subr.mxu0 0.0
    %303 = vmatpush2.msra.mxu0 0.0
    %304 = vmatprep.subr.mxu0 0.0
    %305 = vmatpush2.msra.mxu0 0.0
    %306 = vmatprep.subr.mxu0 0.0
    %307 = vmatpush2.msra.mxu0 0.0
    %308 = vmatprep.subr.mxu0 0.0
    %309 = vmatpush2.msra.mxu0 0.0
    %310 = vmatprep.subr.mxu0 0.0
    %311 = vmatpush2.msra.mxu0 0.0
    %312 = vmatprep.subr.mxu0 0.0
    %313 = vmatpush2.msra.mxu0 0.0
    %314 = vmatprep.mubr.f32.mxu0 0.0
    %315 = vmatmul.mubr.f32.gmra.mxu0 %v244
    %v316 = vpop.f32.mrf.mxu0
    %v317 = vadd.f32 0.0, %v316
    %v318 = vpop.f32.mrf.mxu0
    %v319 = vadd.f32 0.0, %v318
    %320 = vdwg.mxu0
    %v321 = vadd.f32 %v241, %v317
    %v322 = vadd.f32 %v242, %v319
    %v324 = vsel %vm159, %v146, 0
    %v327 = vsel %vm163, %v97, 0
    %v330 = vsel %vm163, %v98, 0
    %332 = vmatprep.subr.mxu0 0.0
    %333 = vmatpush1.msra.mxu0 0.0
    %334 = vmatprep.subr.mxu0 0.0
    %335 = vmatpush1.msra.mxu0 0.0
    %336 = vmatprep.subr.mxu0 0.0
    %337 = vmatpush1.msra.mxu0 0.0
    %338 = vmatprep.subr.mxu0 0.0
    %339 = vmatpush1.msra.mxu0 0.0
    %340 = vmatprep.subr.mxu0 0.0
    %341 = vmatpush1.msra.mxu0 0.0
    %342 = vmatprep.subr.mxu0 0.0
    %343 = vmatpush1.msra.mxu0 0.0
    %344 = vmatprep.subr.mxu0 0.0
    %345 = vmatpush1.msra.mxu0 0.0
    %346 = vmatprep.subr.mxu0 0.0
    %347 = vmatpush1.msra.mxu0 0.0
    %348 = vmatprep.subr.mxu0 0.0
    %349 = vmatpush1.msra.mxu0 0.0
    %350 = vmatprep.subr.mxu0 0.0
    %351 = vmatpush1.msra.mxu0 0.0
    %352 = vmatprep.subr.mxu0 0.0
    %353 = vmatpush1.msra.mxu0 0.0
    %354 = vmatprep.subr.mxu0 0.0
    %355 = vmatpush1.msra.mxu0 0.0
    %356 = vmatprep.subr.mxu0 0.0
    %357 = vmatpush1.msra.mxu0 0.0
    %358 = vmatprep.subr.mxu0 0.0
    %359 = vmatpush1.msra.mxu0 0.0
    %360 = vmatprep.subr.mxu0 0.0
    %361 = vmatpush1.msra.mxu0 0.0
    %362 = vmatprep.subr.mxu0 %v330
    %363 = vmatpush1.msra.mxu0 %v327
    %364 = vmatprep.subr.mxu0 0.0
    %365 = vmatpush2.msra.mxu0 0.0
    %366 = vmatprep.subr.mxu0 0.0
    %367 = vmatpush2.msra.mxu0 0.0
    %368 = vmatprep.subr.mxu0 0.0
    %369 = vmatpush2.msra.mxu0 0.0
    %370 = vmatprep.subr.mxu0 0.0
    %371 = vmatpush2.msra.mxu0 0.0
    %372 = vmatprep.subr.mxu0 0.0
    %373 = vmatpush2.msra.mxu0 0.0
    %374 = vmatprep.subr.mxu0 0.0
    %375 = vmatpush2.msra.mxu0 0.0
    %376 = vmatprep.subr.mxu0 0.0
    %377 = vmatpush2.msra.mxu0 0.0
    %378 = vmatprep.subr.mxu0 0.0
    %379 = vmatpush2.msra.mxu0 0.0
    %380 = vmatprep.subr.mxu0 0.0
    %381 = vmatpush2.msra.mxu0 0.0
    %382 = vmatprep.subr.mxu0 0.0
    %383 = vmatpush2.msra.mxu0 0.0
    %384 = vmatprep.subr.mxu0 0.0
    %385 = vmatpush2.msra.mxu0 0.0
    %386 = vmatprep.subr.mxu0 0.0
    %387 = vmatpush2.msra.mxu0 0.0
    %388 = vmatprep.subr.mxu0 0.0
    %389 = vmatpush2.msra.mxu0 0.0
    %390 = vmatprep.subr.mxu0 0.0
    %391 = vmatpush2.msra.mxu0 0.0
    %392 = vmatprep.subr.mxu0 0.0
    %393 = vmatpush2.msra.mxu0 0.0
    %394 = vmatprep.subr.mxu0 0.0
    %395 = vmatpush2.msra.mxu0 0.0
    %396 = vmatprep.mubr.f32.mxu0 0.0
    %397 = vmatmul.mubr.f32.gmra.mxu0 %v324
    %v398 = vpop.f32.mrf.mxu0
    %v399 = vadd.f32 0.0, %v398
    %v400 = vpop.f32.mrf.mxu0
    %v401 = vadd.f32 0.0, %v400
    %402 = vdwg.mxu0
    %v403 = vadd.f32 %v321, %v399
    %v404 = vadd.f32 %v322, %v401
    %v406 = vsel %vm159, %v147, 0
    %v409 = vsel %vm163, %v117, 0
    %v412 = vsel %vm163, %v118, 0
    %414 = vmatprep.subr.mxu0 0.0
    %415 = vmatpush1.msra.mxu0 0.0
    %416 = vmatprep.subr.mxu0 0.0
    %417 = vmatpush1.msra.mxu0 0.0
    %418 = vmatprep.subr.mxu0 0.0
    %419 = vmatpush1.msra.mxu0 0.0
    %420 = vmatprep.subr.mxu0 0.0
    %421 = vmatpush1.msra.mxu0 0.0
    %422 = vmatprep.subr.mxu0 0.0
    %423 = vmatpush1.msra.mxu0 0.0
    %424 = vmatprep.subr.mxu0 0.0
    %425 = vmatpush1.msra.mxu0 0.0
    %426 = vmatprep.subr.mxu0 0.0
    %427 = vmatpush1.msra.mxu0 0.0
    %428 = vmatprep.subr.mxu0 0.0
    %429 = vmatpush1.msra.mxu0 0.0
    %430 = vmatprep.subr.mxu0 0.0
    %431 = vmatpush1.msra.mxu0 0.0
    %432 = vmatprep.subr.mxu0 0.0
    %433 = vmatpush1.msra.mxu0 0.0
    %434 = vmatprep.subr.mxu0 0.0
    %435 = vmatpush1.msra.mxu0 0.0
    %436 = vmatprep.subr.mxu0 0.0
    %437 = vmatpush1.msra.mxu0 0.0
    %438 = vmatprep.subr.mxu0 0.0
    %439 = vmatpush1.msra.mxu0 0.0
    %440 = vmatprep.subr.mxu0 0.0
    %441 = vmatpush1.msra.mxu0 0.0
    %442 = vmatprep.subr.mxu0 0.0
    %443 = vmatpush1.msra.mxu0 0.0
    %444 = vmatprep.subr.mxu0 %v412
    %445 = vmatpush1.msra.mxu0 %v409
    %446 = vmatprep.subr.mxu0 0.0
    %447 = vmatpush2.msra.mxu0 0.0
    %448 = vmatprep.subr.mxu0 0.0
    %449 = vmatpush2.msra.mxu0 0.0
    %450 = vmatprep.subr.mxu0 0.0
    %451 = vmatpush2.msra.mxu0 0.0
    %452 = vmatprep.subr.mxu0 0.0
    %453 = vmatpush2.msra.mxu0 0.0
    %454 = vmatprep.subr.mxu0 0.0
    %455 = vmatpush2.msra.mxu0 0.0
    %456 = vmatprep.subr.mxu0 0.0
    %457 = vmatpush2.msra.mxu0 0.0
    %458 = vmatprep.subr.mxu0 0.0
    %459 = vmatpush2.msra.mxu0 0.0
    %460 = vmatprep.subr.mxu0 0.0
    %461 = vmatpush2.msra.mxu0 0.0
    %462 = vmatprep.subr.mxu0 0.0
    %463 = vmatpush2.msra.mxu0 0.0
    %464 = vmatprep.subr.mxu0 0.0
    %465 = vmatpush2.msra.mxu0 0.0
    %466 = vmatprep.subr.mxu0 0.0
    %467 = vmatpush2.msra.mxu0 0.0
    %468 = vmatprep.subr.mxu0 0.0
    %469 = vmatpush2.msra.mxu0 0.0
    %470 = vmatprep.subr.mxu0 0.0
    %471 = vmatpush2.msra.mxu0 0.0
    %472 = vmatprep.subr.mxu0 0.0
    %473 = vmatpush2.msra.mxu0 0.0
    %474 = vmatprep.subr.mxu0 0.0
    %475 = vmatpush2.msra.mxu0 0.0
    %476 = vmatprep.subr.mxu0 0.0
    %477 = vmatpush2.msra.mxu0 0.0
    %478 = vmatprep.mubr.f32.mxu0 0.0
    %479 = vmatmul.mubr.f32.gmra.mxu0 %v406
    %v480 = vpop.f32.mrf.mxu0
    %v481 = vadd.f32 0.0, %v480
    %v482 = vpop.f32.mrf.mxu0
    %v483 = vadd.f32 0.0, %v482
    %484 = vdwg.mxu0
    %v485 = vadd.f32 %v403, %v481
    %v486 = vadd.f32 %v404, %v483
    %v488 = vsel %vm159, %v148, 0
    %v490 = vsel %vm163, %v21, 0
    %v492 = vsel %vm163, %v22, 0
    %494 = vmatprep.subr.mxu0 0.0
    %495 = vmatpush1.msra.mxu0 0.0
    %496 = vmatprep.subr.mxu0 0.0
    %497 = vmatpush1.msra.mxu0 0.0
    %498 = vmatprep.subr.mxu0 0.0
    %499 = vmatpush1.msra.mxu0 0.0
    %500 = vmatprep.subr.mxu0 0.0
    %501 = vmatpush1.msra.mxu0 0.0
    %502 = vmatprep.subr.mxu0 0.0
    %503 = vmatpush1.msra.mxu0 0.0
    %504 = vmatprep.subr.mxu0 0.0
    %505 = vmatpush1.msra.mxu0 0.0
    %506 = vmatprep.subr.mxu0 0.0
    %507 = vmatpush1.msra.mxu0 0.0
    %508 = vmatprep.subr.mxu0 0.0
    %509 = vmatpush1.msra.mxu0 0.0
    %510 = vmatprep.subr.mxu0 0.0
    %511 = vmatpush1.msra.mxu0 0.0
    %512 = vmatprep.subr.mxu0 0.0
    %513 = vmatpush1.msra.mxu0 0.0
    %514 = vmatprep.subr.mxu0 0.0
    %515 = vmatpush1.msra.mxu0 0.0
    %516 = vmatprep.subr.mxu0 0.0
    %517 = vmatpush1.msra.mxu0 0.0
    %518 = vmatprep.subr.mxu0 0.0
    %519 = vmatpush1.msra.mxu0 0.0
    %520 = vmatprep.subr.mxu0 0.0
    %521 = vmatpush1.msra.mxu0 0.0
    %522 = vmatprep.subr.mxu0 0.0
    %523 = vmatpush1.msra.mxu0 0.0
    %524 = vmatprep.subr.mxu0 %v492
    %525 = vmatpush1.msra.mxu0 %v490
    %526 = vmatprep.subr.mxu0 0.0
    %527 = vmatpush2.msra.mxu0 0.0
    %528 = vmatprep.subr.mxu0 0.0
    %529 = vmatpush2.msra.mxu0 0.0
    %530 = vmatprep.subr.mxu0 0.0
    %531 = vmatpush2.msra.mxu0 0.0
    %532 = vmatprep.subr.mxu0 0.0
    %533 = vmatpush2.msra.mxu0 0.0
    %534 = vmatprep.subr.mxu0 0.0
    %535 = vmatpush2.msra.mxu0 0.0
    %536 = vmatprep.subr.mxu0 0.0
    %537 = vmatpush2.msra.mxu0 0.0
    %538 = vmatprep.subr.mxu0 0.0
    %539 = vmatpush2.msra.mxu0 0.0
    %540 = vmatprep.subr.mxu0 0.0
    %541 = vmatpush2.msra.mxu0 0.0
    %542 = vmatprep.subr.mxu0 0.0
    %543 = vmatpush2.msra.mxu0 0.0
    %544 = vmatprep.subr.mxu0 0.0
    %545 = vmatpush2.msra.mxu0 0.0
    %546 = vmatprep.subr.mxu0 0.0
    %547 = vmatpush2.msra.mxu0 0.0
    %548 = vmatprep.subr.mxu0 0.0
    %549 = vmatpush2.msra.mxu0 0.0
    %550 = vmatprep.subr.mxu0 0.0
    %551 = vmatpush2.msra.mxu0 0.0
    %552 = vmatprep.subr.mxu0 0.0
    %553 = vmatpush2.msra.mxu0 0.0
    %554 = vmatprep.subr.mxu0 0.0
    %555 = vmatpush2.msra.mxu0 0.0
    %556 = vmatprep.subr.mxu0 0.0
    %557 = vmatpush2.msra.mxu0 0.0
    %558 = vmatprep.mubr.f32.mxu0 0.0
    %559 = vmatmul.mubr.f32.gmra.mxu0 %v488
    %v560 = vpop.f32.mrf.mxu0
    %v561 = vadd.f32 0.0, %v560
    %v562 = vpop.f32.mrf.mxu0
    %v563 = vadd.f32 0.0, %v562
    %564 = vdwg.mxu0
    %v565 = vadd.f32 %v485, %v561
    %v566 = vadd.f32 %v486, %v563
    %v568 = vsel %vm159, %v149, 0
    %v571 = vsel %vm163, %v119, 0
    %v574 = vsel %vm163, %v120, 0
    %576 = vmatprep.subr.mxu0 0.0
    %577 = vmatpush1.msra.mxu0 0.0
    %578 = vmatprep.subr.mxu0 0.0
    %579 = vmatpush1.msra.mxu0 0.0
    %580 = vmatprep.subr.mxu0 0.0
    %581 = vmatpush1.msra.mxu0 0.0
    %582 = vmatprep.subr.mxu0 0.0
    %583 = vmatpush1.msra.mxu0 0.0
    %584 = vmatprep.subr.mxu0 0.0
    %585 = vmatpush1.msra.mxu0 0.0
    %586 = vmatprep.subr.mxu0 0.0
    %587 = vmatpush1.msra.mxu0 0.0
    %588 = vmatprep.subr.mxu0 0.0
    %589 = vmatpush1.msra.mxu0 0.0
    %590 = vmatprep.subr.mxu0 0.0
    %591 = vmatpush1.msra.mxu0 0.0
    %592 = vmatprep.subr.mxu0 0.0
    %593 = vmatpush1.msra.mxu0 0.0
    %594 = vmatprep.subr.mxu0 0.0
    %595 = vmatpush1.msra.mxu0 0.0
    %596 = vmatprep.subr.mxu0 0.0
    %597 = vmatpush1.msra.mxu0 0.0
    %598 = vmatprep.subr.mxu0 0.0
    %599 = vmatpush1.msra.mxu0 0.0
    %600 = vmatprep.subr.mxu0 0.0
    %601 = vmatpush1.msra.mxu0 0.0
    %602 = vmatprep.subr.mxu0 0.0
    %603 = vmatpush1.msra.mxu0 0.0
    %604 = vmatprep.subr.mxu0 0.0
    %605 = vmatpush1.msra.mxu0 0.0
    %606 = vmatprep.subr.mxu0 %v574
    %607 = vmatpush1.msra.mxu0 %v571
    %608 = vmatprep.subr.mxu0 0.0
    %609 = vmatpush2.msra.mxu0 0.0
    %610 = vmatprep.subr.mxu0 0.0
    %611 = vmatpush2.msra.mxu0 0.0
    %612 = vmatprep.subr.mxu0 0.0
    %613 = vmatpush2.msra.mxu0 0.0
    %614 = vmatprep.subr.mxu0 0.0
    %615 = vmatpush2.msra.mxu0 0.0
    %616 = vmatprep.subr.mxu0 0.0
    %617 = vmatpush2.msra.mxu0 0.0
    %618 = vmatprep.subr.mxu0 0.0
    %619 = vmatpush2.msra.mxu0 0.0
    %620 = vmatprep.subr.mxu0 0.0
    %621 = vmatpush2.msra.mxu0 0.0
    %622 = vmatprep.subr.mxu0 0.0
    %623 = vmatpush2.msra.mxu0 0.0
    %624 = vmatprep.subr.mxu0 0.0
    %625 = vmatpush2.msra.mxu0 0.0
    %626 = vmatprep.subr.mxu0 0.0
    %627 = vmatpush2.msra.mxu0 0.0
    %628 = vmatprep.subr.mxu0 0.0
    %629 = vmatpush2.msra.mxu0 0.0
    %630 = vmatprep.subr.mxu0 0.0
    %631 = vmatpush2.msra.mxu0 0.0
    %632 = vmatprep.subr.mxu0 0.0
    %633 = vmatpush2.msra.mxu0 0.0
    %634 = vmatprep.subr.mxu0 0.0
    %635 = vmatpush2.msra.mxu0 0.0
    %636 = vmatprep.subr.mxu0 0.0
    %637 = vmatpush2.msra.mxu0 0.0
    %638 = vmatprep.subr.mxu0 0.0
    %639 = vmatpush2.msra.mxu0 0.0
    %640 = vmatprep.mubr.f32.mxu0 0.0
    %641 = vmatmul.mubr.f32.gmra.mxu0 %v568
    %v642 = vpop.f32.mrf.mxu0
    %v643 = vadd.f32 0.0, %v642
    %v644 = vpop.f32.mrf.mxu0
    %v645 = vadd.f32 0.0, %v644
    %646 = vdwg.mxu0
    %v647 = vadd.f32 %v565, %v643
    %v648 = vadd.f32 %v566, %v645
    %v650 = vsel %vm159, %v150, 0
    %v653 = vsel %vm163, %v140, 0
    %v656 = vsel %vm163, %v141, 0
    %658 = vmatprep.subr.mxu0 0.0
    %659 = vmatpush1.msra.mxu0 0.0
    %660 = vmatprep.subr.mxu0 0.0
    %661 = vmatpush1.msra.mxu0 0.0
    %662 = vmatprep.subr.mxu0 0.0
    %663 = vmatpush1.msra.mxu0 0.0
    %664 = vmatprep.subr.mxu0 0.0
    %665 = vmatpush1.msra.mxu0 0.0
    %666 = vmatprep.subr.mxu0 0.0
    %667 = vmatpush1.msra.mxu0 0.0
    %668 = vmatprep.subr.mxu0 0.0
    %669 = vmatpush1.msra.mxu0 0.0
    %670 = vmatprep.subr.mxu0 0.0
    %671 = vmatpush1.msra.mxu0 0.0
    %672 = vmatprep.subr.mxu0 0.0
    %673 = vmatpush1.msra.mxu0 0.0
    %674 = vmatprep.subr.mxu0 0.0
    %675 = vmatpush1.msra.mxu0 0.0
    %676 = vmatprep.subr.mxu0 0.0
    %677 = vmatpush1.msra.mxu0 0.0
    %678 = vmatprep.subr.mxu0 0.0
    %679 = vmatpush1.msra.mxu0 0.0
    %680 = vmatprep.subr.mxu0 0.0
    %681 = vmatpush1.msra.mxu0 0.0
    %682 = vmatprep.subr.mxu0 0.0
    %683 = vmatpush1.msra.mxu0 0.0
    %684 = vmatprep.subr.mxu0 0.0
    %685 = vmatpush1.msra.mxu0 0.0
    %686 = vmatprep.subr.mxu0 0.0
    %687 = vmatpush1.msra.mxu0 0.0
    %688 = vmatprep.subr.mxu0 %v656
    %689 = vmatpush1.msra.mxu0 %v653
    %690 = vmatprep.subr.mxu0 0.0
    %691 = vmatpush2.msra.mxu0 0.0
    %692 = vmatprep.subr.mxu0 0.0
    %693 = vmatpush2.msra.mxu0 0.0
    %694 = vmatprep.subr.mxu0 0.0
    %695 = vmatpush2.msra.mxu0 0.0
    %696 = vmatprep.subr.mxu0 0.0
    %697 = vmatpush2.msra.mxu0 0.0
    %698 = vmatprep.subr.mxu0 0.0
    %699 = vmatpush2.msra.mxu0 0.0
    %700 = vmatprep.subr.mxu0 0.0
    %701 = vmatpush2.msra.mxu0 0.0
    %702 = vmatprep.subr.mxu0 0.0
    %703 = vmatpush2.msra.mxu0 0.0
    %704 = vmatprep.subr.mxu0 0.0
    %705 = vmatpush2.msra.mxu0 0.0
    %706 = vmatprep.subr.mxu0 0.0
    %707 = vmatpush2.msra.mxu0 0.0
    %708 = vmatprep.subr.mxu0 0.0
    %709 = vmatpush2.msra.mxu0 0.0
    %710 = vmatprep.subr.mxu0 0.0
    %711 = vmatpush2.msra.mxu0 0.0
    %712 = vmatprep.subr.mxu0 0.0
    %713 = vmatpush2.msra.mxu0 0.0
    %714 = vmatprep.subr.mxu0 0.0
    %715 = vmatpush2.msra.mxu0 0.0
    %716 = vmatprep.subr.mxu0 0.0
    %717 = vmatpush2.msra.mxu0 0.0
    %718 = vmatprep.subr.mxu0 0.0
    %719 = vmatpush2.msra.mxu0 0.0
    %720 = vmatprep.subr.mxu0 0.0
    %721 = vmatpush2.msra.mxu0 0.0
    %722 = vmatprep.mubr.f32.mxu0 0.0
    %723 = vmatmul.mubr.f32.gmra.mxu0 %v650
    %v724 = vpop.f32.mrf.mxu0
    %v725 = vadd.f32 0.0, %v724
    %v726 = vpop.f32.mrf.mxu0
    %v727 = vadd.f32 0.0, %v726
    %728 = vdwg.mxu0
    %v729 = vadd.f32 %v647, %v725
    %v730 = vadd.f32 %v648, %v727
    %v732 = vsel %vm159, %v151, 0
    %v734 = vsel %vm163, %v70, 0
    %v736 = vsel %vm163, %v73, 0
    %738 = vmatprep.subr.mxu0 0.0
    %739 = vmatpush1.msra.mxu0 0.0
    %740 = vmatprep.subr.mxu0 0.0
    %741 = vmatpush1.msra.mxu0 0.0
    %742 = vmatprep.subr.mxu0 0.0
    %743 = vmatpush1.msra.mxu0 0.0
    %744 = vmatprep.subr.mxu0 0.0
    %745 = vmatpush1.msra.mxu0 0.0
    %746 = vmatprep.subr.mxu0 0.0
    %747 = vmatpush1.msra.mxu0 0.0
    %748 = vmatprep.subr.mxu0 0.0
    %749 = vmatpush1.msra.mxu0 0.0
    %750 = vmatprep.subr.mxu0 0.0
    %751 = vmatpush1.msra.mxu0 0.0
    %752 = vmatprep.subr.mxu0 0.0
    %753 = vmatpush1.msra.mxu0 0.0
    %754 = vmatprep.subr.mxu0 0.0
    %755 = vmatpush1.msra.mxu0 0.0
    %756 = vmatprep.subr.mxu0 0.0
    %757 = vmatpush1.msra.mxu0 0.0
    %758 = vmatprep.subr.mxu0 0.0
    %759 = vmatpush1.msra.mxu0 0.0
    %760 = vmatprep.subr.mxu0 0.0
    %761 = vmatpush1.msra.mxu0 0.0
    %762 = vmatprep.subr.mxu0 0.0
    %763 = vmatpush1.msra.mxu0 0.0
    %764 = vmatprep.subr.mxu0 0.0
    %765 = vmatpush1.msra.mxu0 0.0
    %766 = vmatprep.subr.mxu0 0.0
    %767 = vmatpush1.msra.mxu0 0.0
    %768 = vmatprep.subr.mxu0 %v736
    %769 = vmatpush1.msra.mxu0 %v734
    %770 = vmatprep.subr.mxu0 0.0
    %771 = vmatpush2.msra.mxu0 0.0
    %772 = vmatprep.subr.mxu0 0.0
    %773 = vmatpush2.msra.mxu0 0.0
    %774 = vmatprep.subr.mxu0 0.0
    %775 = vmatpush2.msra.mxu0 0.0
    %776 = vmatprep.subr.mxu0 0.0
    %777 = vmatpush2.msra.mxu0 0.0
    %778 = vmatprep.subr.mxu0 0.0
    %779 = vmatpush2.msra.mxu0 0.0
    %780 = vmatprep.subr.mxu0 0.0
    %781 = vmatpush2.msra.mxu0 0.0
    %782 = vmatprep.subr.mxu0 0.0
    %783 = vmatpush2.msra.mxu0 0.0
    %784 = vmatprep.subr.mxu0 0.0
    %785 = vmatpush2.msra.mxu0 0.0
    %786 = vmatprep.subr.mxu0 0.0
    %787 = vmatpush2.msra.mxu0 0.0
    %788 = vmatprep.subr.mxu0 0.0
    %789 = vmatpush2.msra.mxu0 0.0
    %790 = vmatprep.subr.mxu0 0.0
    %791 = vmatpush2.msra.mxu0 0.0
    %792 = vmatprep.subr.mxu0 0.0
    %793 = vmatpush2.msra.mxu0 0.0
    %794 = vmatprep.subr.mxu0 0.0
    %795 = vmatpush2.msra.mxu0 0.0
    %796 = vmatprep.subr.mxu0 0.0
    %797 = vmatpush2.msra.mxu0 0.0
    %798 = vmatprep.subr.mxu0 0.0
    %799 = vmatpush2.msra.mxu0 0.0
    %800 = vmatprep.subr.mxu0 0.0
    %801 = vmatpush2.msra.mxu0 0.0
    %802 = vmatprep.mubr.f32.mxu0 0.0
    %803 = vmatmul.mubr.f32.gmra.mxu0 %v732
    %v804 = vpop.f32.mrf.mxu0
    %v805 = vadd.f32 0.0, %v804
    %v806 = vpop.f32.mrf.mxu0
    %v807 = vadd.f32 0.0, %v806
    %808 = vdwg.mxu0
    %v809 = vadd.f32 %v729, %v805
    %v810 = vadd.f32 %v730, %v807
    %v812 = vsel %vm159, %v152, 0
    %v815 = vsel %vm163, %v142, 0
    %v818 = vsel %vm163, %v143, 0
    %820 = vmatprep.subr.mxu0 0.0
    %821 = vmatpush1.msra.mxu0 0.0
    %822 = vmatprep.subr.mxu0 0.0
    %823 = vmatpush1.msra.mxu0 0.0
    %824 = vmatprep.subr.mxu0 0.0
    %825 = vmatpush1.msra.mxu0 0.0
    %826 = vmatprep.subr.mxu0 0.0
    %827 = vmatpush1.msra.mxu0 0.0
    %828 = vmatprep.subr.mxu0 0.0
    %829 = vmatpush1.msra.mxu0 0.0
    %830 = vmatprep.subr.mxu0 0.0
    %831 = vmatpush1.msra.mxu0 0.0
    %832 = vmatprep.subr.mxu0 0.0
    %833 = vmatpush1.msra.mxu0 0.0
    %834 = vmatprep.subr.mxu0 0.0
    %835 = vmatpush1.msra.mxu0 0.0
    %836 = vmatprep.subr.mxu0 0.0
    %837 = vmatpush1.msra.mxu0 0.0
    %838 = vmatprep.subr.mxu0 0.0
    %839 = vmatpush1.msra.mxu0 0.0
    %840 = vmatprep.subr.mxu0 0.0
    %841 = vmatpush1.msra.mxu0 0.0
    %842 = vmatprep.subr.mxu0 0.0
    %843 = vmatpush1.msra.mxu0 0.0
    %844 = vmatprep.subr.mxu0 0.0
    %845 = vmatpush1.msra.mxu0 0.0
    %846 = vmatprep.subr.mxu0 0.0
    %847 = vmatpush1.msra.mxu0 0.0
    %848 = vmatprep.subr.mxu0 0.0
    %849 = vmatpush1.msra.mxu0 0.0
    %850 = vmatprep.subr.mxu0 %v818
    %851 = vmatpush1.msra.mxu0 %v815
    %852 = vmatprep.subr.mxu0 0.0
    %853 = vmatpush2.msra.mxu0 0.0
    %854 = vmatprep.subr.mxu0 0.0
    %855 = vmatpush2.msra.mxu0 0.0
    %856 = vmatprep.subr.mxu0 0.0
    %857 = vmatpush2.msra.mxu0 0.0
    %858 = vmatprep.subr.mxu0 0.0
    %859 = vmatpush2.msra.mxu0 0.0
    %860 = vmatprep.subr.mxu0 0.0
    %861 = vmatpush2.msra.mxu0 0.0
    %862 = vmatprep.subr.mxu0 0.0
    %863 = vmatpush2.msra.mxu0 0.0
    %864 = vmatprep.subr.mxu0 0.0
    %865 = vmatpush2.msra.mxu0 0.0
    %866 = vmatprep.subr.mxu0 0.0
    %867 = vmatpush2.msra.mxu0 0.0
    %868 = vmatprep.subr.mxu0 0.0
    %869 = vmatpush2.msra.mxu0 0.0
    %870 = vmatprep.subr.mxu0 0.0
    %871 = vmatpush2.msra.mxu0 0.0
    %872 = vmatprep.subr.mxu0 0.0
    %873 = vmatpush2.msra.mxu0 0.0
    %874 = vmatprep.subr.mxu0 0.0
    %875 = vmatpush2.msra.mxu0 0.0
    %876 = vmatprep.subr.mxu0 0.0
    %877 = vmatpush2.msra.mxu0 0.0
    %878 = vmatprep.subr.mxu0 0.0
    %879 = vmatpush2.msra.mxu0 0.0
    %880 = vmatprep.subr.mxu0 0.0
    %881 = vmatpush2.msra.mxu0 0.0
    %882 = vmatprep.subr.mxu0 0.0
    %883 = vmatpush2.msra.mxu0 0.0
    %884 = vmatprep.mubr.f32.mxu0 0.0
    %885 = vmatmul.mubr.f32.gmra.mxu0 %v812
    %v886 = vpop.f32.mrf.mxu0
    %v887 = vadd.f32 0.0, %v886
    %v888 = vpop.f32.mrf.mxu0
    %v889 = vadd.f32 0.0, %v888
    %890 = vdwg.mxu0
    %v891 = vadd.f32 %v809, %v887
    %v892 = vadd.f32 %v810, %v889
    %v893 = vmax.f32 %v891, 0.0
    %v894 = vmax.f32 %v892, 0.0
    %895 = vst [vmem:[#allocation2] sm:$0xff] %v893
    %896 = vst [vmem:[#allocation2 + $0x8] sm:$0xff] %v894
    %v897 = vadd.f32 %v893, %v894
    %898 = vadd.xlane.f32.xlu0 %v897
    %v899 = vpop.xlane.xlu0 %898
    %v900 = vadd.f32 %v899, 0.0
    %v901 = vrot.slane %v95, 4
    %v902 = vrot.slane %v96, 4
    %v903 = vsel %vm163, %v901, 0
    %v905 = vsel %vm163, %v902, 0
    %907 = vmatprep.subr.mxu0 0.0
    %908 = vmatpush1.msra.mxu0 0.0
    %909 = vmatprep.subr.mxu0 0.0
    %910 = vmatpush1.msra.mxu0 0.0
    %911 = vmatprep.subr.mxu0 0.0
    %912 = vmatpush1.msra.mxu0 0.0
    %913 = vmatprep.subr.mxu0 0.0
    %914 = vmatpush1.msra.mxu0 0.0
    %915 = vmatprep.subr.mxu0 0.0
    %916 = vmatpush1.msra.mxu0 0.0
    %917 = vmatprep.subr.mxu0 0.0
    %918 = vmatpush1.msra.mxu0 0.0
    %919 = vmatprep.subr.mxu0 0.0
    %920 = vmatpush1.msra.mxu0 0.0
    %921 = vmatprep.subr.mxu0 0.0
    %922 = vmatpush1.msra.mxu0 0.0
    %923 = vmatprep.subr.mxu0 0.0
    %924 = vmatpush1.msra.mxu0 0.0
    %925 = vmatprep.subr.mxu0 0.0
    %926 = vmatpush1.msra.mxu0 0.0
    %927 = vmatprep.subr.mxu0 0.0
    %928 = vmatpush1.msra.mxu0 0.0
    %929 = vmatprep.subr.mxu0 0.0
    %930 = vmatpush1.msra.mxu0 0.0
    %931 = vmatprep.subr.mxu0 0.0
    %932 = vmatpush1.msra.mxu0 0.0
    %933 = vmatprep.subr.mxu0 0.0
    %934 = vmatpush1.msra.mxu0 0.0
    %935 = vmatprep.subr.mxu0 0.0
    %936 = vmatpush1.msra.mxu0 0.0
    %937 = vmatprep.subr.mxu0 %v905
    %938 = vmatpush1.msra.mxu0 %v903
    %939 = vmatprep.subr.mxu0 0.0
    %940 = vmatpush2.msra.mxu0 0.0
    %941 = vmatprep.subr.mxu0 0.0
    %942 = vmatpush2.msra.mxu0 0.0
    %943 = vmatprep.subr.mxu0 0.0
    %944 = vmatpush2.msra.mxu0 0.0
    %945 = vmatprep.subr.mxu0 0.0
    %946 = vmatpush2.msra.mxu0 0.0
    %947 = vmatprep.subr.mxu0 0.0
    %948 = vmatpush2.msra.mxu0 0.0
    %949 = vmatprep.subr.mxu0 0.0
    %950 = vmatpush2.msra.mxu0 0.0
    %951 = vmatprep.subr.mxu0 0.0
    %952 = vmatpush2.msra.mxu0 0.0
    %953 = vmatprep.subr.mxu0 0.0
    %954 = vmatpush2.msra.mxu0 0.0
    %955 = vmatprep.subr.mxu0 0.0
    %956 = vmatpush2.msra.mxu0 0.0
    %957 = vmatprep.subr.mxu0 0.0
    %958 = vmatpush2.msra.mxu0 0.0
    %959 = vmatprep.subr.mxu0 0.0
    %960 = vmatpush2.msra.mxu0 0.0
    %961 = vmatprep.subr.mxu0 0.0
    %962 = vmatpush2.msra.mxu0 0.0
    %963 = vmatprep.subr.mxu0 0.0
    %964 = vmatpush2.msra.mxu0 0.0
    %965 = vmatprep.subr.mxu0 0.0
    %966 = vmatpush2.msra.mxu0 0.0
    %967 = vmatprep.subr.mxu0 0.0
    %968 = vmatpush2.msra.mxu0 0.0
    %969 = vmatprep.subr.mxu0 0.0
    %970 = vmatpush2.msra.mxu0 0.0
    %971 = vmatprep.mubr.f32.mxu0 0.0
    %972 = vmatmul.mubr.f32.gmra.mxu0 %v161
    %v973 = vpop.f32.mrf.mxu0
    %v974 = vadd.f32 0.0, %v973
    %v975 = vpop.f32.mrf.mxu0
    %v976 = vadd.f32 0.0, %v975
    %977 = vdwg.mxu0
    %v978 = vadd.f32 %v157, %v974
    %v979 = vadd.f32 %v157, %v976
    %v980 = vrot.slane %v66, 4
    %v981 = vrot.slane %v64, 4
    %v982 = vsel %vm163, %v980, 0
    %v984 = vsel %vm163, %v981, 0
    %986 = vmatprep.subr.mxu0 0.0
    %987 = vmatpush1.msra.mxu0 0.0
    %988 = vmatprep.subr.mxu0 0.0
    %989 = vmatpush1.msra.mxu0 0.0
    %990 = vmatprep.subr.mxu0 0.0
    %991 = vmatpush1.msra.mxu0 0.0
    %992 = vmatprep.subr.mxu0 0.0
    %993 = vmatpush1.msra.mxu0 0.0
    %994 = vmatprep.subr.mxu0 0.0
    %995 = vmatpush1.msra.mxu0 0.0
    %996 = vmatprep.subr.mxu0 0.0
    %997 = vmatpush1.msra.mxu0 0.0
    %998 = vmatprep.subr.mxu0 0.0
    %999 = vmatpush1.msra.mxu0 0.0
    %1000 = vmatprep.subr.mxu0 0.0
    %1001 = vmatpush1.msra.mxu0 0.0
    %1002 = vmatprep.subr.mxu0 0.0
    %1003 = vmatpush1.msra.mxu0 0.0
    %1004 = vmatprep.subr.mxu0 0.0
    %1005 = vmatpush1.msra.mxu0 0.0
    %1006 = vmatprep.subr.mxu0 0.0
    %1007 = vmatpush1.msra.mxu0 0.0
    %1008 = vmatprep.subr.mxu0 0.0
    %1009 = vmatpush1.msra.mxu0 0.0
    %1010 = vmatprep.subr.mxu0 0.0
    %1011 = vmatpush1.msra.mxu0 0.0
    %1012 = vmatprep.subr.mxu0 0.0
    %1013 = vmatpush1.msra.mxu0 0.0
    %1014 = vmatprep.subr.mxu0 0.0
    %1015 = vmatpush1.msra.mxu0 0.0
    %1016 = vmatprep.subr.mxu0 %v984
    %1017 = vmatpush1.msra.mxu0 %v982
    %1018 = vmatprep.subr.mxu0 0.0
    %1019 = vmatpush2.msra.mxu0 0.0
    %1020 = vmatprep.subr.mxu0 0.0
    %1021 = vmatpush2.msra.mxu0 0.0
    %1022 = vmatprep.subr.mxu0 0.0
    %1023 = vmatpush2.msra.mxu0 0.0
    %1024 = vmatprep.subr.mxu0 0.0
    %1025 = vmatpush2.msra.mxu0 0.0
    %1026 = vmatprep.subr.mxu0 0.0
    %1027 = vmatpush2.msra.mxu0 0.0
    %1028 = vmatprep.subr.mxu0 0.0
    %1029 = vmatpush2.msra.mxu0 0.0
    %1030 = vmatprep.subr.mxu0 0.0
    %1031 = vmatpush2.msra.mxu0 0.0
    %1032 = vmatprep.subr.mxu0 0.0
    %1033 = vmatpush2.msra.mxu0 0.0
    %1034 = vmatprep.subr.mxu0 0.0
    %1035 = vmatpush2.msra.mxu0 0.0
    %1036 = vmatprep.subr.mxu0 0.0
    %1037 = vmatpush2.msra.mxu0 0.0
    %1038 = vmatprep.subr.mxu0 0.0
    %1039 = vmatpush2.msra.mxu0 0.0
    %1040 = vmatprep.subr.mxu0 0.0
    %1041 = vmatpush2.msra.mxu0 0.0
    %1042 = vmatprep.subr.mxu0 0.0
    %1043 = vmatpush2.msra.mxu0 0.0
    %1044 = vmatprep.subr.mxu0 0.0
    %1045 = vmatpush2.msra.mxu0 0.0
    %1046 = vmatprep.subr.mxu0 0.0
    %1047 = vmatpush2.msra.mxu0 0.0
    %1048 = vmatprep.subr.mxu0 0.0
    %1049 = vmatpush2.msra.mxu0 0.0
    %1050 = vmatprep.mubr.f32.mxu0 0.0
    %1051 = vmatmul.mubr.f32.gmra.mxu0 %v244
    %v1052 = vpop.f32.mrf.mxu0
    %v1053 = vadd.f32 0.0, %v1052
    %v1054 = vpop.f32.mrf.mxu0
    %v1055 = vadd.f32 0.0, %v1054
    %1056 = vdwg.mxu0
    %v1057 = vadd.f32 %v978, %v1053
    %v1058 = vadd.f32 %v979, %v1055
    %v1059 = vrot.slane %v97, 4
    %v1060 = vrot.slane %v98, 4
    %v1061 = vsel %vm163, %v1059, 0
    %v1063 = vsel %vm163, %v1060, 0
    %1065 = vmatprep.subr.mxu0 0.0
    %1066 = vmatpush1.msra.mxu0 0.0
    %1067 = vmatprep.subr.mxu0 0.0
    %1068 = vmatpush1.msra.mxu0 0.0
    %1069 = vmatprep.subr.mxu0 0.0
    %1070 = vmatpush1.msra.mxu0 0.0
    %1071 = vmatprep.subr.mxu0 0.0
    %1072 = vmatpush1.msra.mxu0 0.0
    %1073 = vmatprep.subr.mxu0 0.0
    %1074 = vmatpush1.msra.mxu0 0.0
    %1075 = vmatprep.subr.mxu0 0.0
    %1076 = vmatpush1.msra.mxu0 0.0
    %1077 = vmatprep.subr.mxu0 0.0
    %1078 = vmatpush1.msra.mxu0 0.0
    %1079 = vmatprep.subr.mxu0 0.0
    %1080 = vmatpush1.msra.mxu0 0.0
    %1081 = vmatprep.subr.mxu0 0.0
    %1082 = vmatpush1.msra.mxu0 0.0
    %1083 = vmatprep.subr.mxu0 0.0
    %1084 = vmatpush1.msra.mxu0 0.0
    %1085 = vmatprep.subr.mxu0 0.0
    %1086 = vmatpush1.msra.mxu0 0.0
    %1087 = vmatprep.subr.mxu0 0.0
    %1088 = vmatpush1.msra.mxu0 0.0
    %1089 = vmatprep.subr.mxu0 0.0
    %1090 = vmatpush1.msra.mxu0 0.0
    %1091 = vmatprep.subr.mxu0 0.0
    %1092 = vmatpush1.msra.mxu0 0.0
    %1093 = vmatprep.subr.mxu0 0.0
    %1094 = vmatpush1.msra.mxu0 0.0
    %1095 = vmatprep.subr.mxu0 %v1063
    %1096 = vmatpush1.msra.mxu0 %v1061
    %1097 = vmatprep.subr.mxu0 0.0
    %1098 = vmatpush2.msra.mxu0 0.0
    %1099 = vmatprep.subr.mxu0 0.0
    %1100 = vmatpush2.msra.mxu0 0.0
    %1101 = vmatprep.subr.mxu0 0.0
    %1102 = vmatpush2.msra.mxu0 0.0
    %1103 = vmatprep.subr.mxu0 0.0
    %1104 = vmatpush2.msra.mxu0 0.0
    %1105 = vmatprep.subr.mxu0 0.0
    %1106 = vmatpush2.msra.mxu0 0.0
    %1107 = vmatprep.subr.mxu0 0.0
    %1108 = vmatpush2.msra.mxu0 0.0
    %1109 = vmatprep.subr.mxu0 0.0
    %1110 = vmatpush2.msra.mxu0 0.0
    %1111 = vmatprep.subr.mxu0 0.0
    %1112 = vmatpush2.msra.mxu0 0.0
    %1113 = vmatprep.subr.mxu0 0.0
    %1114 = vmatpush2.msra.mxu0 0.0
    %1115 = vmatprep.subr.mxu0 0.0
    %1116 = vmatpush2.msra.mxu0 0.0
    %1117 = vmatprep.subr.mxu0 0.0
    %1118 = vmatpush2.msra.mxu0 0.0
    %1119 = vmatprep.subr.mxu0 0.0
    %1120 = vmatpush2.msra.mxu0 0.0
    %1121 = vmatprep.subr.mxu0 0.0
    %1122 = vmatpush2.msra.mxu0 0.0
    %1123 = vmatprep.subr.mxu0 0.0
    %1124 = vmatpush2.msra.mxu0 0.0
    %1125 = vmatprep.subr.mxu0 0.0
    %1126 = vmatpush2.msra.mxu0 0.0
    %1127 = vmatprep.subr.mxu0 0.0
    %1128 = vmatpush2.msra.mxu0 0.0
    %1129 = vmatprep.mubr.f32.mxu0 0.0
    %1130 = vmatmul.mubr.f32.gmra.mxu0 %v324
    %v1131 = vpop.f32.mrf.mxu0
    %v1132 = vadd.f32 0.0, %v1131
    %v1133 = vpop.f32.mrf.mxu0
    %v1134 = vadd.f32 0.0, %v1133
    %1135 = vdwg.mxu0
    %v1136 = vadd.f32 %v1057, %v1132
    %v1137 = vadd.f32 %v1058, %v1134
    %v1138 = vrot.slane %v117, 4
    %v1139 = vrot.slane %v118, 4
    %v1140 = vsel %vm163, %v1138, 0
    %v1142 = vsel %vm163, %v1139, 0
    %1144 = vmatprep.subr.mxu0 0.0
    %1145 = vmatpush1.msra.mxu0 0.0
    %1146 = vmatprep.subr.mxu0 0.0
    %1147 = vmatpush1.msra.mxu0 0.0
    %1148 = vmatprep.subr.mxu0 0.0
    %1149 = vmatpush1.msra.mxu0 0.0
    %1150 = vmatprep.subr.mxu0 0.0
    %1151 = vmatpush1.msra.mxu0 0.0
    %1152 = vmatprep.subr.mxu0 0.0
    %1153 = vmatpush1.msra.mxu0 0.0
    %1154 = vmatprep.subr.mxu0 0.0
    %1155 = vmatpush1.msra.mxu0 0.0
    %1156 = vmatprep.subr.mxu0 0.0
    %1157 = vmatpush1.msra.mxu0 0.0
    %1158 = vmatprep.subr.mxu0 0.0
    %1159 = vmatpush1.msra.mxu0 0.0
    %1160 = vmatprep.subr.mxu0 0.0
    %1161 = vmatpush1.msra.mxu0 0.0
    %1162 = vmatprep.subr.mxu0 0.0
    %1163 = vmatpush1.msra.mxu0 0.0
    %1164 = vmatprep.subr.mxu0 0.0
    %1165 = vmatpush1.msra.mxu0 0.0
    %1166 = vmatprep.subr.mxu0 0.0
    %1167 = vmatpush1.msra.mxu0 0.0
    %1168 = vmatprep.subr.mxu0 0.0
    %1169 = vmatpush1.msra.mxu0 0.0
    %1170 = vmatprep.subr.mxu0 0.0
    %1171 = vmatpush1.msra.mxu0 0.0
    %1172 = vmatprep.subr.mxu0 0.0
    %1173 = vmatpush1.msra.mxu0 0.0
    %1174 = vmatprep.subr.mxu0 %v1142
    %1175 = vmatpush1.msra.mxu0 %v1140
    %1176 = vmatprep.subr.mxu0 0.0
    %1177 = vmatpush2.msra.mxu0 0.0
    %1178 = vmatprep.subr.mxu0 0.0
    %1179 = vmatpush2.msra.mxu0 0.0
    %1180 = vmatprep.subr.mxu0 0.0
    %1181 = vmatpush2.msra.mxu0 0.0
    %1182 = vmatprep.subr.mxu0 0.0
    %1183 = vmatpush2.msra.mxu0 0.0
    %1184 = vmatprep.subr.mxu0 0.0
    %1185 = vmatpush2.msra.mxu0 0.0
    %1186 = vmatprep.subr.mxu0 0.0
    %1187 = vmatpush2.msra.mxu0 0.0
    %1188 = vmatprep.subr.mxu0 0.0
    %1189 = vmatpush2.msra.mxu0 0.0
    %1190 = vmatprep.subr.mxu0 0.0
    %1191 = vmatpush2.msra.mxu0 0.0
    %1192 = vmatprep.subr.mxu0 0.0
    %1193 = vmatpush2.msra.mxu0 0.0
    %1194 = vmatprep.subr.mxu0 0.0
    %1195 = vmatpush2.msra.mxu0 0.0
    %1196 = vmatprep.subr.mxu0 0.0
    %1197 = vmatpush2.msra.mxu0 0.0
    %1198 = vmatprep.subr.mxu0 0.0
    %1199 = vmatpush2.msra.mxu0 0.0
    %1200 = vmatprep.subr.mxu0 0.0
    %1201 = vmatpush2.msra.mxu0 0.0
    %1202 = vmatprep.subr.mxu0 0.0
    %1203 = vmatpush2.msra.mxu0 0.0
    %1204 = vmatprep.subr.mxu0 0.0
    %1205 = vmatpush2.msra.mxu0 0.0
    %1206 = vmatprep.subr.mxu0 0.0
    %1207 = vmatpush2.msra.mxu0 0.0
    %1208 = vmatprep.mubr.f32.mxu0 0.0
    %1209 = vmatmul.mubr.f32.gmra.mxu0 %v406
    %v1210 = vpop.f32.mrf.mxu0
    %v1211 = vadd.f32 0.0, %v1210
    %v1212 = vpop.f32.mrf.mxu0
    %v1213 = vadd.f32 0.0, %v1212
    %1214 = vdwg.mxu0
    %v1215 = vadd.f32 %v1136, %v1211
    %v1216 = vadd.f32 %v1137, %v1213
    %v1217 = vrot.slane %v21, 4
    %v1218 = vrot.slane %v22, 4
    %v1219 = vsel %vm163, %v1217, 0
    %v1221 = vsel %vm163, %v1218, 0
    %1223 = vmatprep.subr.mxu0 0.0
    %1224 = vmatpush1.msra.mxu0 0.0
    %1225 = vmatprep.subr.mxu0 0.0
    %1226 = vmatpush1.msra.mxu0 0.0
    %1227 = vmatprep.subr.mxu0 0.0
    %1228 = vmatpush1.msra.mxu0 0.0
    %1229 = vmatprep.subr.mxu0 0.0
    %1230 = vmatpush1.msra.mxu0 0.0
    %1231 = vmatprep.subr.mxu0 0.0
    %1232 = vmatpush1.msra.mxu0 0.0
    %1233 = vmatprep.subr.mxu0 0.0
    %1234 = vmatpush1.msra.mxu0 0.0
    %1235 = vmatprep.subr.mxu0 0.0
    %1236 = vmatpush1.msra.mxu0 0.0
    %1237 = vmatprep.subr.mxu0 0.0
    %1238 = vmatpush1.msra.mxu0 0.0
    %1239 = vmatprep.subr.mxu0 0.0
    %1240 = vmatpush1.msra.mxu0 0.0
    %1241 = vmatprep.subr.mxu0 0.0
    %1242 = vmatpush1.msra.mxu0 0.0
    %1243 = vmatprep.subr.mxu0 0.0
    %1244 = vmatpush1.msra.mxu0 0.0
    %1245 = vmatprep.subr.mxu0 0.0
    %1246 = vmatpush1.msra.mxu0 0.0
    %1247 = vmatprep.subr.mxu0 0.0
    %1248 = vmatpush1.msra.mxu0 0.0
    %1249 = vmatprep.subr.mxu0 0.0
    %1250 = vmatpush1.msra.mxu0 0.0
    %1251 = vmatprep.subr.mxu0 0.0
    %1252 = vmatpush1.msra.mxu0 0.0
    %1253 = vmatprep.subr.mxu0 %v1221
    %1254 = vmatpush1.msra.mxu0 %v1219
    %1255 = vmatprep.subr.mxu0 0.0
    %1256 = vmatpush2.msra.mxu0 0.0
    %1257 = vmatprep.subr.mxu0 0.0
    %1258 = vmatpush2.msra.mxu0 0.0
    %1259 = vmatprep.subr.mxu0 0.0
    %1260 = vmatpush2.msra.mxu0 0.0
    %1261 = vmatprep.subr.mxu0 0.0
    %1262 = vmatpush2.msra.mxu0 0.0
    %1263 = vmatprep.subr.mxu0 0.0
    %1264 = vmatpush2.msra.mxu0 0.0
    %1265 = vmatprep.subr.mxu0 0.0
    %1266 = vmatpush2.msra.mxu0 0.0
    %1267 = vmatprep.subr.mxu0 0.0
    %1268 = vmatpush2.msra.mxu0 0.0
    %1269 = vmatprep.subr.mxu0 0.0
    %1270 = vmatpush2.msra.mxu0 0.0
    %1271 = vmatprep.subr.mxu0 0.0
    %1272 = vmatpush2.msra.mxu0 0.0
    %1273 = vmatprep.subr.mxu0 0.0
    %1274 = vmatpush2.msra.mxu0 0.0
    %1275 = vmatprep.subr.mxu0 0.0
    %1276 = vmatpush2.msra.mxu0 0.0
    %1277 = vmatprep.subr.mxu0 0.0
    %1278 = vmatpush2.msra.mxu0 0.0
    %1279 = vmatprep.subr.mxu0 0.0
    %1280 = vmatpush2.msra.mxu0 0.0
    %1281 = vmatprep.subr.mxu0 0.0
    %1282 = vmatpush2.msra.mxu0 0.0
    %1283 = vmatprep.subr.mxu0 0.0
    %1284 = vmatpush2.msra.mxu0 0.0
    %1285 = vmatprep.subr.mxu0 0.0
    %1286 = vmatpush2.msra.mxu0 0.0
    %1287 = vmatprep.mubr.f32.mxu0 0.0
    %1288 = vmatmul.mubr.f32.gmra.mxu0 %v488
    %v1289 = vpop.f32.mrf.mxu0
    %v1290 = vadd.f32 0.0, %v1289
    %v1291 = vpop.f32.mrf.mxu0
    %v1292 = vadd.f32 0.0, %v1291
    %1293 = vdwg.mxu0
    %v1294 = vadd.f32 %v1215, %v1290
    %v1295 = vadd.f32 %v1216, %v1292
    %v1296 = vrot.slane %v119, 4
    %v1297 = vrot.slane %v120, 4
    %v1298 = vsel %vm163, %v1296, 0
    %v1300 = vsel %vm163, %v1297, 0
    %1302 = vmatprep.subr.mxu0 0.0
    %1303 = vmatpush1.msra.mxu0 0.0
    %1304 = vmatprep.subr.mxu0 0.0
    %1305 = vmatpush1.msra.mxu0 0.0
    %1306 = vmatprep.subr.mxu0 0.0
    %1307 = vmatpush1.msra.mxu0 0.0
    %1308 = vmatprep.subr.mxu0 0.0
    %1309 = vmatpush1.msra.mxu0 0.0
    %1310 = vmatprep.subr.mxu0 0.0
    %1311 = vmatpush1.msra.mxu0 0.0
    %1312 = vmatprep.subr.mxu0 0.0
    %1313 = vmatpush1.msra.mxu0 0.0
    %1314 = vmatprep.subr.mxu0 0.0
    %1315 = vmatpush1.msra.mxu0 0.0
    %1316 = vmatprep.subr.mxu0 0.0
    %1317 = vmatpush1.msra.mxu0 0.0
    %1318 = vmatprep.subr.mxu0 0.0
    %1319 = vmatpush1.msra.mxu0 0.0
    %1320 = vmatprep.subr.mxu0 0.0
    %1321 = vmatpush1.msra.mxu0 0.0
    %1322 = vmatprep.subr.mxu0 0.0
    %1323 = vmatpush1.msra.mxu0 0.0
    %1324 = vmatprep.subr.mxu0 0.0
    %1325 = vmatpush1.msra.mxu0 0.0
    %1326 = vmatprep.subr.mxu0 0.0
    %1327 = vmatpush1.msra.mxu0 0.0
    %1328 = vmatprep.subr.mxu0 0.0
    %1329 = vmatpush1.msra.mxu0 0.0
    %1330 = vmatprep.subr.mxu0 0.0
    %1331 = vmatpush1.msra.mxu0 0.0
    %1332 = vmatprep.subr.mxu0 %v1300
    %1333 = vmatpush1.msra.mxu0 %v1298
    %1334 = vmatprep.subr.mxu0 0.0
    %1335 = vmatpush2.msra.mxu0 0.0
    %1336 = vmatprep.subr.mxu0 0.0
    %1337 = vmatpush2.msra.mxu0 0.0
    %1338 = vmatprep.subr.mxu0 0.0
    %1339 = vmatpush2.msra.mxu0 0.0
    %1340 = vmatprep.subr.mxu0 0.0
    %1341 = vmatpush2.msra.mxu0 0.0
    %1342 = vmatprep.subr.mxu0 0.0
    %1343 = vmatpush2.msra.mxu0 0.0
    %1344 = vmatprep.subr.mxu0 0.0
    %1345 = vmatpush2.msra.mxu0 0.0
    %1346 = vmatprep.subr.mxu0 0.0
    %1347 = vmatpush2.msra.mxu0 0.0
    %1348 = vmatprep.subr.mxu0 0.0
    %1349 = vmatpush2.msra.mxu0 0.0
    %1350 = vmatprep.subr.mxu0 0.0
    %1351 = vmatpush2.msra.mxu0 0.0
    %1352 = vmatprep.subr.mxu0 0.0
    %1353 = vmatpush2.msra.mxu0 0.0
    %1354 = vmatprep.subr.mxu0 0.0
    %1355 = vmatpush2.msra.mxu0 0.0
    %1356 = vmatprep.subr.mxu0 0.0
    %1357 = vmatpush2.msra.mxu0 0.0
    %1358 = vmatprep.subr.mxu0 0.0
    %1359 = vmatpush2.msra.mxu0 0.0
    %1360 = vmatprep.subr.mxu0 0.0
    %1361 = vmatpush2.msra.mxu0 0.0
    %1362 = vmatprep.subr.mxu0 0.0
    %1363 = vmatpush2.msra.mxu0 0.0
    %1364 = vmatprep.subr.mxu0 0.0
    %1365 = vmatpush2.msra.mxu0 0.0
    %1366 = vmatprep.mubr.f32.mxu0 0.0
    %1367 = vmatmul.mubr.f32.gmra.mxu0 %v568
    %v1368 = vpop.f32.mrf.mxu0
    %v1369 = vadd.f32 0.0, %v1368
    %v1370 = vpop.f32.mrf.mxu0
    %v1371 = vadd.f32 0.0, %v1370
    %1372 = vdwg.mxu0
    %v1373 = vadd.f32 %v1294, %v1369
    %v1374 = vadd.f32 %v1295, %v1371
    %v1375 = vrot.slane %v140, 4
    %v1376 = vrot.slane %v141, 4
    %v1377 = vsel %vm163, %v1375, 0
    %v1379 = vsel %vm163, %v1376, 0
    %1381 = vmatprep.subr.mxu0 0.0
    %1382 = vmatpush1.msra.mxu0 0.0
    %1383 = vmatprep.subr.mxu0 0.0
    %1384 = vmatpush1.msra.mxu0 0.0
    %1385 = vmatprep.subr.mxu0 0.0
    %1386 = vmatpush1.msra.mxu0 0.0
    %1387 = vmatprep.subr.mxu0 0.0
    %1388 = vmatpush1.msra.mxu0 0.0
    %1389 = vmatprep.subr.mxu0 0.0
    %1390 = vmatpush1.msra.mxu0 0.0
    %1391 = vmatprep.subr.mxu0 0.0
    %1392 = vmatpush1.msra.mxu0 0.0
    %1393 = vmatprep.subr.mxu0 0.0
    %1394 = vmatpush1.msra.mxu0 0.0
    %1395 = vmatprep.subr.mxu0 0.0
    %1396 = vmatpush1.msra.mxu0 0.0
    %1397 = vmatprep.subr.mxu0 0.0
    %1398 = vmatpush1.msra.mxu0 0.0
    %1399 = vmatprep.subr.mxu0 0.0
    %1400 = vmatpush1.msra.mxu0 0.0
    %1401 = vmatprep.subr.mxu0 0.0
    %1402 = vmatpush1.msra.mxu0 0.0
    %1403 = vmatprep.subr.mxu0 0.0
    %1404 = vmatpush1.msra.mxu0 0.0
    %1405 = vmatprep.subr.mxu0 0.0
    %1406 = vmatpush1.msra.mxu0 0.0
    %1407 = vmatprep.subr.mxu0 0.0
    %1408 = vmatpush1.msra.mxu0 0.0
    %1409 = vmatprep.subr.mxu0 0.0
    %1410 = vmatpush1.msra.mxu0 0.0
    %1411 = vmatprep.subr.mxu0 %v1379
    %1412 = vmatpush1.msra.mxu0 %v1377
    %1413 = vmatprep.subr.mxu0 0.0
    %1414 = vmatpush2.msra.mxu0 0.0
    %1415 = vmatprep.subr.mxu0 0.0
    %1416 = vmatpush2.msra.mxu0 0.0
    %1417 = vmatprep.subr.mxu0 0.0
    %1418 = vmatpush2.msra.mxu0 0.0
    %1419 = vmatprep.subr.mxu0 0.0
    %1420 = vmatpush2.msra.mxu0 0.0
    %1421 = vmatprep.subr.mxu0 0.0
    %1422 = vmatpush2.msra.mxu0 0.0
    %1423 = vmatprep.subr.mxu0 0.0
    %1424 = vmatpush2.msra.mxu0 0.0
    %1425 = vmatprep.subr.mxu0 0.0
    %1426 = vmatpush2.msra.mxu0 0.0
    %1427 = vmatprep.subr.mxu0 0.0
    %1428 = vmatpush2.msra.mxu0 0.0
    %1429 = vmatprep.subr.mxu0 0.0
    %1430 = vmatpush2.msra.mxu0 0.0
    %1431 = vmatprep.subr.mxu0 0.0
    %1432 = vmatpush2.msra.mxu0 0.0
    %1433 = vmatprep.subr.mxu0 0.0
    %1434 = vmatpush2.msra.mxu0 0.0
    %1435 = vmatprep.subr.mxu0 0.0
    %1436 = vmatpush2.msra.mxu0 0.0
    %1437 = vmatprep.subr.mxu0 0.0
    %1438 = vmatpush2.msra.mxu0 0.0
    %1439 = vmatprep.subr.mxu0 0.0
    %1440 = vmatpush2.msra.mxu0 0.0
    %1441 = vmatprep.subr.mxu0 0.0
    %1442 = vmatpush2.msra.mxu0 0.0
    %1443 = vmatprep.subr.mxu0 0.0
    %1444 = vmatpush2.msra.mxu0 0.0
    %1445 = vmatprep.mubr.f32.mxu0 0.0
    %1446 = vmatmul.mubr.f32.gmra.mxu0 %v650
    %v1447 = vpop.f32.mrf.mxu0
    %v1448 = vadd.f32 0.0, %v1447
    %v1449 = vpop.f32.mrf.mxu0
    %v1450 = vadd.f32 0.0, %v1449
    %1451 = vdwg.mxu0
    %v1452 = vadd.f32 %v1373, %v1448
    %v1453 = vadd.f32 %v1374, %v1450
    %v1454 = vrot.slane %v70, 4
    %v1455 = vrot.slane %v73, 4
    %v1456 = vsel %vm163, %v1454, 0
    %v1458 = vsel %vm163, %v1455, 0
    %1460 = vmatprep.subr.mxu0 0.0
    %1461 = vmatpush1.msra.mxu0 0.0
    %1462 = vmatprep.subr.mxu0 0.0
    %1463 = vmatpush1.msra.mxu0 0.0
    %1464 = vmatprep.subr.mxu0 0.0
    %1465 = vmatpush1.msra.mxu0 0.0
    %1466 = vmatprep.subr.mxu0 0.0
    %1467 = vmatpush1.msra.mxu0 0.0
    %1468 = vmatprep.subr.mxu0 0.0
    %1469 = vmatpush1.msra.mxu0 0.0
    %1470 = vmatprep.subr.mxu0 0.0
    %1471 = vmatpush1.msra.mxu0 0.0
    %1472 = vmatprep.subr.mxu0 0.0
    %1473 = vmatpush1.msra.mxu0 0.0
    %1474 = vmatprep.subr.mxu0 0.0
    %1475 = vmatpush1.msra.mxu0 0.0
    %1476 = vmatprep.subr.mxu0 0.0
    %1477 = vmatpush1.msra.mxu0 0.0
    %1478 = vmatprep.subr.mxu0 0.0
    %1479 = vmatpush1.msra.mxu0 0.0
    %1480 = vmatprep.subr.mxu0 0.0
    %1481 = vmatpush1.msra.mxu0 0.0
    %1482 = vmatprep.subr.mxu0 0.0
    %1483 = vmatpush1.msra.mxu0 0.0
    %1484 = vmatprep.subr.mxu0 0.0
    %1485 = vmatpush1.msra.mxu0 0.0
    %1486 = vmatprep.subr.mxu0 0.0
    %1487 = vmatpush1.msra.mxu0 0.0
    %1488 = vmatprep.subr.mxu0 0.0
    %1489 = vmatpush1.msra.mxu0 0.0
    %1490 = vmatprep.subr.mxu0 %v1458
    %1491 = vmatpush1.msra.mxu0 %v1456
    %1492 = vmatprep.subr.mxu0 0.0
    %1493 = vmatpush2.msra.mxu0 0.0
    %1494 = vmatprep.subr.mxu0 0.0
    %1495 = vmatpush2.msra.mxu0 0.0
    %1496 = vmatprep.subr.mxu0 0.0
    %1497 = vmatpush2.msra.mxu0 0.0
    %1498 = vmatprep.subr.mxu0 0.0
    %1499 = vmatpush2.msra.mxu0 0.0
    %1500 = vmatprep.subr.mxu0 0.0
    %1501 = vmatpush2.msra.mxu0 0.0
    %1502 = vmatprep.subr.mxu0 0.0
    %1503 = vmatpush2.msra.mxu0 0.0
    %1504 = vmatprep.subr.mxu0 0.0
    %1505 = vmatpush2.msra.mxu0 0.0
    %1506 = vmatprep.subr.mxu0 0.0
    %1507 = vmatpush2.msra.mxu0 0.0
    %1508 = vmatprep.subr.mxu0 0.0
    %1509 = vmatpush2.msra.mxu0 0.0
    %1510 = vmatprep.subr.mxu0 0.0
    %1511 = vmatpush2.msra.mxu0 0.0
    %1512 = vmatprep.subr.mxu0 0.0
    %1513 = vmatpush2.msra.mxu0 0.0
    %1514 = vmatprep.subr.mxu0 0.0
    %1515 = vmatpush2.msra.mxu0 0.0
    %1516 = vmatprep.subr.mxu0 0.0
    %1517 = vmatpush2.msra.mxu0 0.0
    %1518 = vmatprep.subr.mxu0 0.0
    %1519 = vmatpush2.msra.mxu0 0.0
    %1520 = vmatprep.subr.mxu0 0.0
    %1521 = vmatpush2.msra.mxu0 0.0
    %1522 = vmatprep.subr.mxu0 0.0
    %1523 = vmatpush2.msra.mxu0 0.0
    %1524 = vmatprep.mubr.f32.mxu0 0.0
    %1525 = vmatmul.mubr.f32.gmra.mxu0 %v732
    %v1526 = vpop.f32.mrf.mxu0
    %v1527 = vadd.f32 0.0, %v1526
    %v1528 = vpop.f32.mrf.mxu0
    %v1529 = vadd.f32 0.0, %v1528
    %1530 = vdwg.mxu0
    %v1531 = vadd.f32 %v1452, %v1527
    %v1532 = vadd.f32 %v1453, %v1529
    %v1533 = vrot.slane %v142, 4
    %v1534 = vrot.slane %v143, 4
    %v1535 = vsel %vm163, %v1533, 0
    %v1537 = vsel %vm163, %v1534, 0
    %1539 = vmatprep.subr.mxu0 0.0
    %1540 = vmatpush1.msra.mxu0 0.0
    %1541 = vmatprep.subr.mxu0 0.0
    %1542 = vmatpush1.msra.mxu0 0.0
    %1543 = vmatprep.subr.mxu0 0.0
    %1544 = vmatpush1.msra.mxu0 0.0
    %1545 = vmatprep.subr.mxu0 0.0
    %1546 = vmatpush1.msra.mxu0 0.0
    %1547 = vmatprep.subr.mxu0 0.0
    %1548 = vmatpush1.msra.mxu0 0.0
    %1549 = vmatprep.subr.mxu0 0.0
    %1550 = vmatpush1.msra.mxu0 0.0
    %1551 = vmatprep.subr.mxu0 0.0
    %1552 = vmatpush1.msra.mxu0 0.0
    %1553 = vmatprep.subr.mxu0 0.0
    %1554 = vmatpush1.msra.mxu0 0.0
    %1555 = vmatprep.subr.mxu0 0.0
    %1556 = vmatpush1.msra.mxu0 0.0
    %1557 = vmatprep.subr.mxu0 0.0
    %1558 = vmatpush1.msra.mxu0 0.0
    %1559 = vmatprep.subr.mxu0 0.0
    %1560 = vmatpush1.msra.mxu0 0.0
    %1561 = vmatprep.subr.mxu0 0.0
    %1562 = vmatpush1.msra.mxu0 0.0
    %1563 = vmatprep.subr.mxu0 0.0
    %1564 = vmatpush1.msra.mxu0 0.0
    %1565 = vmatprep.subr.mxu0 0.0
    %1566 = vmatpush1.msra.mxu0 0.0
    %1567 = vmatprep.subr.mxu0 0.0
    %1568 = vmatpush1.msra.mxu0 0.0
    %1569 = vmatprep.subr.mxu0 %v1537
    %1570 = vmatpush1.msra.mxu0 %v1535
    %1571 = vmatprep.subr.mxu0 0.0
    %1572 = vmatpush2.msra.mxu0 0.0
    %1573 = vmatprep.subr.mxu0 0.0
    %1574 = vmatpush2.msra.mxu0 0.0
    %1575 = vmatprep.subr.mxu0 0.0
    %1576 = vmatpush2.msra.mxu0 0.0
    %1577 = vmatprep.subr.mxu0 0.0
    %1578 = vmatpush2.msra.mxu0 0.0
    %1579 = vmatprep.subr.mxu0 0.0
    %1580 = vmatpush2.msra.mxu0 0.0
    %1581 = vmatprep.subr.mxu0 0.0
    %1582 = vmatpush2.msra.mxu0 0.0
    %1583 = vmatprep.subr.mxu0 0.0
    %1584 = vmatpush2.msra.mxu0 0.0
    %1585 = vmatprep.subr.mxu0 0.0
    %1586 = vmatpush2.msra.mxu0 0.0
    %1587 = vmatprep.subr.mxu0 0.0
    %1588 = vmatpush2.msra.mxu0 0.0
    %1589 = vmatprep.subr.mxu0 0.0
    %1590 = vmatpush2.msra.mxu0 0.0
    %1591 = vmatprep.subr.mxu0 0.0
    %1592 = vmatpush2.msra.mxu0 0.0
    %1593 = vmatprep.subr.mxu0 0.0
    %1594 = vmatpush2.msra.mxu0 0.0
    %1595 = vmatprep.subr.mxu0 0.0
    %1596 = vmatpush2.msra.mxu0 0.0
    %1597 = vmatprep.subr.mxu0 0.0
    %1598 = vmatpush2.msra.mxu0 0.0
    %1599 = vmatprep.subr.mxu0 0.0
    %1600 = vmatpush2.msra.mxu0 0.0
    %1601 = vmatprep.subr.mxu0 0.0
    %1602 = vmatpush2.msra.mxu0 0.0
    %1603 = vmatprep.mubr.f32.mxu0 0.0
    %1604 = vmatmul.mubr.f32.gmra.mxu0 %v812
    %v1605 = vpop.f32.mrf.mxu0
    %v1606 = vadd.f32 0.0, %v1605
    %v1607 = vpop.f32.mrf.mxu0
    %v1608 = vadd.f32 0.0, %v1607
    %1609 = vdwg.mxu0
    %v1610 = vadd.f32 %v1531, %v1606
    %v1611 = vadd.f32 %v1532, %v1608
    %v1612 = vmax.f32 %v1610, 0.0
    %v1613 = vmax.f32 %v1611, 0.0
    %s1614 = scalar_lea.vmem [#allocation2], 16
    %1615 = vst [vmem:[%s1614] sm:$0xff] %v1612
    %1616 = vst [vmem:[%s1614 + $0x8] sm:$0xff] %v1613
    %v1617 = vadd.f32 %v1612, %v1613
    %1618 = vadd.xlane.f32.xlu0 %v1617
    %v1619 = vpop.xlane.xlu0 %1618
    %v1620 = vadd.f32 %v900, %v1619
    %v1621 = vmul.f32 %v1620, 0.001953125
    %v1622 = vld [vmem:[#allocation2] sm:$0xff]
    %v1623 = vld [vmem:[#allocation2 + $0x8] sm:$0xff]
    %v1624 = vsub.f32 %v1622, %v1621
    %v1625 = vsub.f32 %v1623, %v1621
    %v1626 = vmul.f32 %v1624, %v1624
    %v1627 = vmul.f32 %v1625, %v1625
    %v1628 = vadd.f32 %v1626, %v1627
    %1629 = vadd.xlane.f32.xlu0 %v1628
    %v1630 = vpop.xlane.xlu0 %1629
    %v1631 = vadd.f32 %v1630, 0.0
    %v1632 = vld [vmem:[%s1614] sm:$0xff]
    %v1633 = vld [vmem:[%s1614 + $0x8] sm:$0xff]
    %v1634 = vsub.f32 %v1632, %v1621
    %v1635 = vsub.f32 %v1633, %v1621
    %v1636 = vmul.f32 %v1634, %v1634
    %v1637 = vmul.f32 %v1635, %v1635
    %v1638 = vadd.f32 %v1636, %v1637
    %1639 = vadd.xlane.f32.xlu0 %v1638
    %v1640 = vpop.xlane.xlu0 %1639
    %v1641 = vadd.f32 %v1631, %v1640
    %v1642 = vmul.f32 %v1641, 0.001953125
    %v1643 = vadd.f32 %v1642, 1e-05
    %v1644 = vrsqrt.pop %v1643
    %v1645 = vld [vmem:[%s3] sm:$0xff]
    %v1646 = vmul.f32 %v1645, %v1644
    %v1647 = vld [vmem:[%s4] sm:$0xff]
    %v1648 = vmul.f32 %v1621, %v1646
    %v1649 = vsub.f32 %v1647, %v1648
    %1651 = vset.pattern.permute.xlu0 0
    %1652 = vperm.xlu0 %1651, %v1646
    %v1653 = vpop.permute.xlu0 %1652
    %1656 = vset.pattern.permute.xlu0 0
    %1657 = vperm.xlu0 %1656, %v1649
    %v1658 = vpop.permute.xlu0 %1657
    %v1660 = vmul.f32 %v1622, %v1653
    %v1661 = vmul.f32 %v1623, %v1653
    %v1662 = vadd.f32 %v1660, %v1658
    %v1663 = vadd.f32 %v1661, %v1658
    %1664 = vst [vmem:[#allocation2] sm:$0xff] %v1662
    %1665 = vst [vmem:[#allocation2 + $0x8] sm:$0xff] %v1663
    %v1666 = vld [vmem:[%s1614] sm:$0xff]
    %v1667 = vld [vmem:[%s1614 + $0x8] sm:$0xff]
    %v1668 = vmul.f32 %v1666, %v1653
    %v1669 = vmul.f32 %v1667, %v1653
    %v1670 = vadd.f32 %v1668, %v1658
    %v1671 = vadd.f32 %v1669, %v1658
    %1672 = vst [vmem:[%s1614] sm:$0xff] %v1670
    %1673 = vst [vmem:[%s1614 + $0x8] sm:$0xff] %v1671
    // Predicated region
    $region22: #{tpu_custom_call.1} parent=1 // pred_check
      _
    $region23: #{tpu_custom_call.1} parent=1 // pred_check_branch
      %1675 = sbr.rel (0) target = $region25
    $region24: #{tpu_custom_call.1} parent=1 // pred_region
      %s1677 = ssub.s32 512, 512
      %1678 = vsyncadd [#allocation3], %s1677
      %s1679 = sshll.u32 [#allocation2], 4
      %s1680 = int_to_ptr.vmem [resolvable:$true] %s1679
      %1685 = dma.vmem_to_hbm [thread:$0]  %s1680, 512, %s5, [#allocation3], 256, 256, 16
    $region25: #{tpu_custom_call.1} parent=1 // pred_fallthru
      _
    // Predicated region
    $region26: #{tpu_custom_call.1} parent=1 // pred_check
      _
    $region27: #{tpu_custom_call.1} parent=1 // pred_check_branch
      %1687 = sbr.rel (0) target = $region29
    $region28: #{tpu_custom_call.1} parent=1 // pred_region
      %1688 = dma.done [#allocation3], 512
    $region29: #{tpu_custom_call.1} parent=1 // pred_fallthru
      _
    %1689 = vsyncpa [#allocation3], 1

</llo_original>
